<compile_context>
chip_gen: v7x
topology: tpu7x:2x2x1
jax: 0.10.0
libtpu: 0.0.40
codegen_flags: <defaults>
</compile_context>

<pallas_src>
import jax
import jax.numpy as jnp
from jax import lax
from jax.experimental import pallas as pl
from jax.experimental.pallas import tpu as pltpu


# ------------------------- BiLSTM (both directions fused) --------------------
def make_bilstm_kernel(L, B, Hd):
    G = 4 * Hd

    def kernel(x_ref, w_ih_ref, w_hh_ref, b_ref, h_out_ref, xp_ref):
        w_ih = w_ih_ref[...]                       # (H, 8*Hd) bf16  [fwd | bwd]
        b = b_ref[...]                             # (1, 8*Hd) f32 (b_ih + b_hh, both dirs)
        w_hh_f = w_hh_ref[0]                       # (Hd, 4*Hd) bf16
        w_hh_b = w_hh_ref[1]                       # (Hd, 4*Hd) bf16

        # Hoisted input projection for BOTH directions: one big MXU matmul,
        # bias folded in, result parked in VMEM scratch (time-major rows).
        xp_ref[...] = (jnp.dot(x_ref[...], w_ih,
                               preferred_element_type=jnp.float32) + b)

        h_f = jnp.zeros((B, Hd), jnp.float32)
        c_f = jnp.zeros((B, Hd), jnp.float32)
        h_b = jnp.zeros((B, Hd), jnp.float32)
        c_b = jnp.zeros((B, Hd), jnp.float32)

        def cell(gates, c):
            sig = jax.nn.sigmoid(gates)            # one full-width EUP pass
            i_g = sig[:, 0 * Hd:1 * Hd]
            f_g = sig[:, 1 * Hd:2 * Hd]
            o_g = sig[:, 3 * Hd:4 * Hd]
            g_g = jnp.tanh(gates[:, 2 * Hd:3 * Hd])
            c_new = f_g * c + i_g * g_g
            h_new = o_g * jnp.tanh(c_new)
            return h_new, c_new

        # Static time indices; forward & backward interleaved per iteration
        # (two independent dependency chains).  Python unroll is fine at toy L.
        for t in range(L):
            tb = L - 1 - t
            xp_f = xp_ref[t * B:(t + 1) * B, 0:G]          # (B, 4*Hd)
            xp_b = xp_ref[tb * B:(tb + 1) * B, G:2 * G]    # (B, 4*Hd)
            gates_f = xp_f + jnp.dot(h_f.astype(jnp.bfloat16), w_hh_f,
                                     preferred_element_type=jnp.float32)
            gates_b = xp_b + jnp.dot(h_b.astype(jnp.bfloat16), w_hh_b,
                                     preferred_element_type=jnp.float32)
            h_f, c_f = cell(gates_f, c_f)
            h_b, c_b = cell(gates_b, c_b)
            h_out_ref[t * B:(t + 1) * B, 0:Hd] = h_f
            h_out_ref[tb * B:(tb + 1) * B, Hd:2 * Hd] = h_b

    return kernel


def bilstm(x2d, w_ih, w_hh, b, L, B, Hd):
    return pl.pallas_call(
        make_bilstm_kernel(L, B, Hd),
        out_shape=jax.ShapeDtypeStruct((L * B, 2 * Hd), jnp.float32),
        scratch_shapes=[pltpu.VMEM((L * B, 8 * Hd), jnp.float32)],
    )(x2d, w_ih, w_hh, b)


# ---------- fused FC + CRF partition + gold score + Viterbi + backtrack ------
def _crf_kernel(h_ref, wfc_ref, bfc_ref, trans_ref, tt_ref, start_ref, end_ref,
                lbl_ref, len_ref, preds_ref, llh_ref, emis_ref):
    B, L = lbl_ref.shape
    T = trans_ref.shape[0]

    wfc = wfc_ref[...]                              # (2*Hd, T) bf16
    bfc = bfc_ref[...]                              # (1, T) f32
    trans = trans_ref[...]                          # (T, T) f32 [from, to]
    tt3 = tt_ref[...].reshape(1, T, T)              # (1, T_to, T_from), hoisted
    start = start_ref[...]                          # (1, T)
    end = end_ref[...]                              # (1, T)
    labels = lbl_ref[...]                           # (B, L) int32
    seq_len = len_ref[...]                          # (B, 1) int32

    # Hoisted FC: all emissions in one (L*B, 2*Hd) x (2*Hd, T) matmul.
    emis_ref[...] = (jnp.dot(h_ref[...].astype(jnp.bfloat16), wfc,
                             preferred_element_type=jnp.float32) + bfc)

    iota_t = lax.broadcasted_iota(jnp.int32, (B, T), 1)

    def emit_at(t):
        return emis_ref[t * B:(t + 1) * B, :]       # (B, T)

    def onehot_at(t):
        return (iota_t == labels[:, t:t + 1]).astype(jnp.float32)   # (B, T)

    # ------------------------------- t = 0 -----------------------------------
    emit0 = emit_at(0)
    oh0 = onehot_at(0)
    alpha = start + emit0                           # mask[:, 0] == 1 (torchcrf req.)
    score = start + emit0
    num = jnp.sum((start + emit0) * oh0, axis=-1, keepdims=True)     # (B, 1)
    last_oh = oh0
    bps = [jnp.zeros((B, T), jnp.int32)]            # slot 0 never used

    # --------------------------- t = 1 .. L-1 ---------------------------------
    for t in range(1, L):
        emit = emit_at(t)
        oh = onehot_at(t)
        oh_prev = onehot_at(t - 1)
        valid = t < seq_len                         # (B, 1) bool
        maskf = valid.astype(jnp.float32)

        # CRF forward (log-partition): logsumexp over "from" tags.
        sc = alpha[:, None, :] + tt3                # (B, T_to, T_from)
        m = jnp.max(sc, axis=-1)
        lse = m + jnp.log(jnp.sum(jnp.exp(sc - m[:, :, None]), axis=-1))
        alpha = jnp.where(valid, lse + emit, alpha)

        # Viterbi: max / argmax over "from" tags (emission is constant over
        # the from-axis, so add it after the reduction).
        comb = score[:, None, :] + tt3
        best = jnp.max(comb, axis=-1) + emit
        idx = jnp.argmax(comb, axis=-1).astype(jnp.int32)
        score = jnp.where(valid, best, score)
        bps.append(idx)

        # Gold-path (numerator) score, torchcrf._compute_score semantics.
        trans_term = jnp.sum(
            jnp.dot(oh_prev, trans, preferred_element_type=jnp.float32) * oh,
            axis=-1, keepdims=True)
        emit_term = jnp.sum(emit * oh, axis=-1, keepdims=True)
        num = num + maskf * (trans_term + emit_term)
        last_oh = jnp.where(valid, oh, last_oh)     # one-hot of last *valid* tag

    alpha_end = alpha + end
    score_end = score + end
    num = num + jnp.sum(end * last_oh, axis=-1, keepdims=True)

    # Per-sequence log-likelihood (numerator - log-partition), computed in-kernel.
    m_a = jnp.max(alpha_end, axis=-1, keepdims=True)
    log_z = m_a + jnp.log(jnp.sum(jnp.exp(alpha_end - m_a), axis=-1, keepdims=True))
    llh_ref[...] = num - log_z

    # --------------------- in-kernel Viterbi backtrack ------------------------
    ms = jnp.max(score_end, axis=-1, keepdims=True)
    cand = jnp.where(score_end == ms, iota_t.astype(jnp.float32), float(T))
    best_last = jnp.min(cand, axis=-1, keepdims=True).astype(jnp.int32)  # (B,1)

    last_pos = seq_len - 1                          # (B, 1)
    lane_l = lax.broadcasted_iota(jnp.int32, (B, L), 1)
    preds = jnp.full((B, L), -100, jnp.int32)
    cur_idx = best_last
    for t in range(L - 1, -1, -1):
        if t == L - 1:
            cur_idx = best_last
        else:
            cur_oh = (iota_t == cur_idx).astype(jnp.float32)
            from_bp = jnp.sum(bps[t + 1].astype(jnp.float32) * cur_oh,
                              axis=-1, keepdims=True).astype(jnp.int32)
            cur_idx = jnp.where(t == last_pos, best_last,
                                jnp.where(t < last_pos, from_bp, best_last))
        col = jnp.where(t < seq_len, cur_idx, -100)         # pad -> -100
        preds = jnp.where(lane_l == t, col, preds)
    preds_ref[...] = preds


def fc_crf(h2d, wfc, bfc, trans, start, end, labels, seq_lens):
    B, L = labels.shape
    T = trans.shape[0]
    LB = h2d.shape[0]
    # TODO(synk): on v7x add a batch-chunk grid axis (dimension_semantics
    # ("parallel",)) so the CRF phase shards across both TensorCores.
    return pl.pallas_call(
        _crf_kernel,
        out_shape=(jax.ShapeDtypeStruct((B, L), jnp.int32),      # predictions
                   jax.ShapeDtypeStruct((B, 1), jnp.float32)),   # log-likelihood
        scratch_shapes=[pltpu.VMEM((LB, T), jnp.float32)],       # emissions
    )(h2d, wfc, bfc, trans, trans.T, start, end, labels, seq_lens)


# -------------------------------- full forward --------------------------------
def bilstm_crf_forward(params, feats, mask, labels=None):
    B, L, H = feats.shape
    Hd = params["w_hh"].shape[1]

    # Time-major flatten so the kernels only ever touch 2-D tiles.
    # TODO(synk): at production sizes fold this relayout into the kernel pipeline.
    x2d = jnp.transpose(feats, (1, 0, 2)).reshape(L * B, H).astype(jnp.bfloat16)

    h2d = bilstm(x2d, params["w_ih"], params["w_hh"], params["b"], L, B, Hd)

    # Dropout is identity in eval/inference mode.
    # TODO(synk): training-mode dropout (random mask + 1/(1-p) scale) not implemented.

    seq_lens = jnp.sum(mask, axis=1).astype(jnp.int32)[:, None]   # (B, 1)
    if labels is not None:
        lbl = jnp.where(labels == -100, 0, labels).astype(jnp.int32)
    else:
        lbl = jnp.zeros((B, L), jnp.int32)

    preds, llh = fc_crf(h2d, params["wfc"], params["bfc"], params["trans"],
                        params["start"], params["end"], lbl, seq_lens)

    loss = -jnp.mean(llh[:, 0]) if labels is not None else None
    return loss, preds


# -------------------------------- param init ----------------------------------
def init_params(key, H, Hd, T):
    ks = jax.random.split(key, 8)
    u = lambda k, s: jax.random.uniform(k, s, jnp.float32, -0.1, 0.1)
    return {
        # LSTM weights pre-transposed & stacked for the kernel:
        #   gates = x @ W_ih + h @ W_hh + b   (PyTorch gate order i,f,g,o)
        # W_ih columns: [forward 4*Hd | backward 4*Hd]; bf16 for the MXU.
        "w_ih": u(ks[0], (H, 8 * Hd)).astype(jnp.bfloat16),
        "w_hh": u(ks[1], (2, Hd, 4 * Hd)).astype(jnp.bfloat16),   # [fwd, bwd]
        "b":    u(ks[2], (1, 8 * Hd)),                            # b_ih + b_hh combined
        "wfc":  u(ks[3], (2 * Hd, T)).astype(jnp.bfloat16),       # Linear weight.T
        "bfc":  u(ks[4], (1, T)),
        "start": u(ks[5], (1, T)),
        "end":   u(ks[6], (1, T)),
        "trans": u(ks[7], (T, T)),
    }


if __name__ == "__main__":
    B, L, H, Hd, T = 2, 8, 32, 32, 5

    key = jax.random.PRNGKey(0)
    kp, kf, kl = jax.random.split(key, 3)
    params = init_params(kp, H, Hd, T)

    feats = jax.random.normal(kf, (B, L, H), jnp.float32)
    # mask[:, 0] must be 1 (torchcrf requirement); prefix-valid masks
    mask = jnp.array([[1, 1, 1, 1, 1, 1, 1, 1],
                      [1, 1, 1, 1, 1, 0, 0, 0]], dtype=jnp.int32)
    labels = jax.random.randint(kl, (B, L), 0, T, dtype=jnp.int32)
    labels = jnp.where(mask == 1, labels, -100)

    loss, preds = bilstm_crf_forward(params, feats, mask, labels)
    jax.block_until_ready((loss, preds))
    assert preds.shape == (B, L)
    assert loss.shape == ()
    print("KERNEL_OK")
</pallas_src>

<mosaic_0001>
module attributes {stable_mosaic.version = 11 : i64} {
  func.func @kernel(%arg0: memref<16x32xbf16, #tpu.memory_space<vmem>>, %arg1: memref<32x256xbf16, #tpu.memory_space<vmem>>, %arg2: memref<2x32x128xbf16, #tpu.memory_space<vmem>>, %arg3: memref<1x256xf32, #tpu.memory_space<vmem>>, %arg4: memref<16x64xf32, #tpu.memory_space<vmem>>, %arg5: memref<16x256xf32, #tpu.memory_space<vmem>>) attributes {dimension_semantics = [], scalar_prefetch = 0 : i64, scratch_operands = 1 : i64, tpu.core_type = #tpu.core_type<tc>} {
    %c0 = arith.constant 0 : index
    %c0_0 = arith.constant 0 : index
    %0 = vector.load %arg1[%c0, %c0_0] : memref<32x256xbf16, #tpu.memory_space<vmem>>, vector<32x256xbf16>
    %c0_1 = arith.constant 0 : index
    %c0_2 = arith.constant 0 : index
    %1 = vector.load %arg3[%c0_1, %c0_2] : memref<1x256xf32, #tpu.memory_space<vmem>>, vector<1x256xf32>
    %c0_3 = arith.constant 0 : index
    %c0_4 = arith.constant 0 : index
    %c0_5 = arith.constant 0 : index
    %2 = vector.load %arg2[%c0_3, %c0_4, %c0_5] : memref<2x32x128xbf16, #tpu.memory_space<vmem>>, vector<1x32x128xbf16>
    %3 = vector.shape_cast %2 : vector<1x32x128xbf16> to vector<32x128xbf16>
    %c1 = arith.constant 1 : index
    %c0_6 = arith.constant 0 : index
    %c0_7 = arith.constant 0 : index
    %4 = vector.load %arg2[%c1, %c0_6, %c0_7] : memref<2x32x128xbf16, #tpu.memory_space<vmem>>, vector<1x32x128xbf16>
    %5 = vector.shape_cast %4 : vector<1x32x128xbf16> to vector<32x128xbf16>
    %c0_8 = arith.constant 0 : index
    %c0_9 = arith.constant 0 : index
    %6 = vector.load %arg0[%c0_8, %c0_9] : memref<16x32xbf16, #tpu.memory_space<vmem>>, vector<16x32xbf16>
    %cst = arith.constant dense<0.000000e+00> : vector<16x256xf32>
    %7 = tpu.matmul %6, %0, %cst {dimension_numbers = #tpu.dot_dimension_numbers<[1], [0], [0], [1], [0, 0, 1, 1], [], []>} : vector<16x32xbf16>, vector<32x256xbf16>, vector<16x256xf32> -> vector<16x256xf32>
    %8 = vector.broadcast %1 : vector<1x256xf32> to vector<16x256xf32>
    %9 = arith.addf %7, %8 : vector<16x256xf32>
    %c0_10 = arith.constant 0 : index
    %c0_11 = arith.constant 0 : index
    %10 = vector.load %arg5[%c0_10, %c0_11] : memref<16x256xf32, #tpu.memory_space<vmem>>, vector<16x256xf32>
    tpu.vector_store %arg5[%c0_10, %c0_11], %9 {strides = array<i32>} : memref<16x256xf32, #tpu.memory_space<vmem>>, vector<16x256xf32>,
    %cst_12 = arith.constant 0.000000e+00 : f32
    %11 = vector.broadcast %cst_12 : f32 to vector<2x32xf32>
    %cst_13 = arith.constant 0.000000e+00 : f32
    %12 = vector.broadcast %cst_13 : f32 to vector<2x32xf32>
    %cst_14 = arith.constant 0.000000e+00 : f32
    %13 = vector.broadcast %cst_14 : f32 to vector<2x32xf32>
    %cst_15 = arith.constant 0.000000e+00 : f32
    %14 = vector.broadcast %cst_15 : f32 to vector<2x32xf32>
    %c0_16 = arith.constant 0 : index
    %c0_17 = arith.constant 0 : index
    %15 = vector.load %arg5[%c0_16, %c0_17] : memref<16x256xf32, #tpu.memory_space<vmem>>, vector<2x128xf32>
    %c14 = arith.constant 14 : index
    %c128 = arith.constant 128 : index
    %16 = vector.load %arg5[%c14, %c128] : memref<16x256xf32, #tpu.memory_space<vmem>>, vector<2x128xf32>
    %17 = arith.truncf %11 : vector<2x32xf32> to vector<2x32xbf16>
    %cst_18 = arith.constant dense<0.000000e+00> : vector<2x128xf32>
    %18 = tpu.matmul %17, %3, %cst_18 {dimension_numbers = #tpu.dot_dimension_numbers<[1], [0], [0], [1], [0, 0, 1, 1], [], []>} : vector<2x32xbf16>, vector<32x128xbf16>, vector<2x128xf32> -> vector<2x128xf32>
    %19 = arith.addf %15, %18 : vector<2x128xf32>
    %20 = arith.truncf %13 : vector<2x32xf32> to vector<2x32xbf16>
    %cst_19 = arith.constant dense<0.000000e+00> : vector<2x128xf32>
    %21 = tpu.matmul %20, %5, %cst_19 {dimension_numbers = #tpu.dot_dimension_numbers<[1], [0], [0], [1], [0, 0, 1, 1], [], []>} : vector<2x32xbf16>, vector<32x128xbf16>, vector<2x128xf32> -> vector<2x128xf32>
    %22 = arith.addf %16, %21 : vector<2x128xf32>
    %23 = arith.negf %19 : vector<2x128xf32>
    %24 = math.exp %23 : vector<2x128xf32>
    %cst_20 = arith.constant 1.000000e+00 : f32
    %25 = vector.broadcast %cst_20 : f32 to vector<2x128xf32>
    %26 = arith.addf %25, %24 : vector<2x128xf32>
    %27 = arith.divf %25, %26 : vector<2x128xf32>
    %28 = vector.extract_strided_slice %27 {offsets = [0, 0], sizes = [2, 32], strides = [1, 1]} : vector<2x128xf32> to vector<2x32xf32>
    %29 = vector.extract_strided_slice %27 {offsets = [0, 32], sizes = [2, 32], strides = [1, 1]} : vector<2x128xf32> to vector<2x32xf32>
    %30 = vector.extract_strided_slice %27 {offsets = [0, 96], sizes = [2, 32], strides = [1, 1]} : vector<2x128xf32> to vector<2x32xf32>
    %31 = vector.extract_strided_slice %19 {offsets = [0, 64], sizes = [2, 32], strides = [1, 1]} : vector<2x128xf32> to vector<2x32xf32>
    %32 = math.tanh %31 : vector<2x32xf32>
    %33 = arith.mulf %29, %12 : vector<2x32xf32>
    %34 = arith.mulf %28, %32 : vector<2x32xf32>
    %35 = arith.addf %33, %34 : vector<2x32xf32>
    %36 = math.tanh %35 : vector<2x32xf32>
    %37 = arith.mulf %30, %36 : vector<2x32xf32>
    %38 = arith.negf %22 : vector<2x128xf32>
    %39 = math.exp %38 : vector<2x128xf32>
    %cst_21 = arith.constant 1.000000e+00 : f32
    %40 = vector.broadcast %cst_21 : f32 to vector<2x128xf32>
    %41 = arith.addf %40, %39 : vector<2x128xf32>
    %42 = arith.divf %40, %41 : vector<2x128xf32>
    %43 = vector.extract_strided_slice %42 {offsets = [0, 0], sizes = [2, 32], strides = [1, 1]} : vector<2x128xf32> to vector<2x32xf32>
    %44 = vector.extract_strided_slice %42 {offsets = [0, 32], sizes = [2, 32], strides = [1, 1]} : vector<2x128xf32> to vector<2x32xf32>
    %45 = vector.extract_strided_slice %42 {offsets = [0, 96], sizes = [2, 32], strides = [1, 1]} : vector<2x128xf32> to vector<2x32xf32>
    %46 = vector.extract_strided_slice %22 {offsets = [0, 64], sizes = [2, 32], strides = [1, 1]} : vector<2x128xf32> to vector<2x32xf32>
    %47 = math.tanh %46 : vector<2x32xf32>
    %48 = arith.mulf %44, %14 : vector<2x32xf32>
    %49 = arith.mulf %43, %47 : vector<2x32xf32>
    %50 = arith.addf %48, %49 : vector<2x32xf32>
    %51 = math.tanh %50 : vector<2x32xf32>
    %52 = arith.mulf %45, %51 : vector<2x32xf32>
    %c0_22 = arith.constant 0 : index
    %c0_23 = arith.constant 0 : index
    %53 = vector.load %arg4[%c0_22, %c0_23] : memref<16x64xf32, #tpu.memory_space<vmem>>, vector<2x32xf32>
    tpu.vector_store %arg4[%c0_22, %c0_23], %37 {strides = array<i32>} : memref<16x64xf32, #tpu.memory_space<vmem>>, vector<2x32xf32>,
    %c14_24 = arith.constant 14 : index
    %c32 = arith.constant 32 : index
    %54 = vector.load %arg4[%c14_24, %c32] : memref<16x64xf32, #tpu.memory_space<vmem>>, vector<2x32xf32>
    tpu.vector_store %arg4[%c14_24, %c32], %52 {strides = array<i32>} : memref<16x64xf32, #tpu.memory_space<vmem>>, vector<2x32xf32>,
    %c2 = arith.constant 2 : index
    %c0_25 = arith.constant 0 : index
    %55 = vector.load %arg5[%c2, %c0_25] : memref<16x256xf32, #tpu.memory_space<vmem>>, vector<2x128xf32>
    %c12 = arith.constant 12 : index
    %c128_26 = arith.constant 128 : index
    %56 = vector.load %arg5[%c12, %c128_26] : memref<16x256xf32, #tpu.memory_space<vmem>>, vector<2x128xf32>
    %57 = arith.truncf %37 : vector<2x32xf32> to vector<2x32xbf16>
    %cst_27 = arith.constant dense<0.000000e+00> : vector<2x128xf32>
    %58 = tpu.matmul %57, %3, %cst_27 {dimension_numbers = #tpu.dot_dimension_numbers<[1], [0], [0], [1], [0, 0, 1, 1], [], []>} : vector<2x32xbf16>, vector<32x128xbf16>, vector<2x128xf32> -> vector<2x128xf32>
    %59 = arith.addf %55, %58 : vector<2x128xf32>
    %60 = arith.truncf %52 : vector<2x32xf32> to vector<2x32xbf16>
    %cst_28 = arith.constant dense<0.000000e+00> : vector<2x128xf32>
    %61 = tpu.matmul %60, %5, %cst_28 {dimension_numbers = #tpu.dot_dimension_numbers<[1], [0], [0], [1], [0, 0, 1, 1], [], []>} : vector<2x32xbf16>, vector<32x128xbf16>, vector<2x128xf32> -> vector<2x128xf32>
    %62 = arith.addf %56, %61 : vector<2x128xf32>
    %63 = arith.negf %59 : vector<2x128xf32>
    %64 = math.exp %63 : vector<2x128xf32>
    %cst_29 = arith.constant 1.000000e+00 : f32
    %65 = vector.broadcast %cst_29 : f32 to vector<2x128xf32>
    %66 = arith.addf %65, %64 : vector<2x128xf32>
    %67 = arith.divf %65, %66 : vector<2x128xf32>
    %68 = vector.extract_strided_slice %67 {offsets = [0, 0], sizes = [2, 32], strides = [1, 1]} : vector<2x128xf32> to vector<2x32xf32>
    %69 = vector.extract_strided_slice %67 {offsets = [0, 32], sizes = [2, 32], strides = [1, 1]} : vector<2x128xf32> to vector<2x32xf32>
    %70 = vector.extract_strided_slice %67 {offsets = [0, 96], sizes = [2, 32], strides = [1, 1]} : vector<2x128xf32> to vector<2x32xf32>
    %71 = vector.extract_strided_slice %59 {offsets = [0, 64], sizes = [2, 32], strides = [1, 1]} : vector<2x128xf32> to vector<2x32xf32>
    %72 = math.tanh %71 : vector<2x32xf32>
    %73 = arith.mulf %69, %35 : vector<2x32xf32>
    %74 = arith.mulf %68, %72 : vector<2x32xf32>
    %75 = arith.addf %73, %74 : vector<2x32xf32>
    %76 = math.tanh %75 : vector<2x32xf32>
    %77 = arith.mulf %70, %76 : vector<2x32xf32>
    %78 = arith.negf %62 : vector<2x128xf32>
    %79 = math.exp %78 : vector<2x128xf32>
    %cst_30 = arith.constant 1.000000e+00 : f32
    %80 = vector.broadcast %cst_30 : f32 to vector<2x128xf32>
    %81 = arith.addf %80, %79 : vector<2x128xf32>
    %82 = arith.divf %80, %81 : vector<2x128xf32>
    %83 = vector.extract_strided_slice %82 {offsets = [0, 0], sizes = [2, 32], strides = [1, 1]} : vector<2x128xf32> to vector<2x32xf32>
    %84 = vector.extract_strided_slice %82 {offsets = [0, 32], sizes = [2, 32], strides = [1, 1]} : vector<2x128xf32> to vector<2x32xf32>
    %85 = vector.extract_strided_slice %82 {offsets = [0, 96], sizes = [2, 32], strides = [1, 1]} : vector<2x128xf32> to vector<2x32xf32>
    %86 = vector.extract_strided_slice %62 {offsets = [0, 64], sizes = [2, 32], strides = [1, 1]} : vector<2x128xf32> to vector<2x32xf32>
    %87 = math.tanh %86 : vector<2x32xf32>
    %88 = arith.mulf %84, %50 : vector<2x32xf32>
    %89 = arith.mulf %83, %87 : vector<2x32xf32>
    %90 = arith.addf %88, %89 : vector<2x32xf32>
    %91 = math.tanh %90 : vector<2x32xf32>
    %92 = arith.mulf %85, %91 : vector<2x32xf32>
    %c2_31 = arith.constant 2 : index
    %c0_32 = arith.constant 0 : index
    %93 = vector.load %arg4[%c2_31, %c0_32] : memref<16x64xf32, #tpu.memory_space<vmem>>, vector<2x32xf32>
    tpu.vector_store %arg4[%c2_31, %c0_32], %77 {strides = array<i32>} : memref<16x64xf32, #tpu.memory_space<vmem>>, vector<2x32xf32>,
    %c12_33 = arith.constant 12 : index
    %c32_34 = arith.constant 32 : index
    %94 = vector.load %arg4[%c12_33, %c32_34] : memref<16x64xf32, #tpu.memory_space<vmem>>, vector<2x32xf32>
    tpu.vector_store %arg4[%c12_33, %c32_34], %92 {strides = array<i32>} : memref<16x64xf32, #tpu.memory_space<vmem>>, vector<2x32xf32>,
    %c4 = arith.constant 4 : index
    %c0_35 = arith.constant 0 : index
    %95 = vector.load %arg5[%c4, %c0_35] : memref<16x256xf32, #tpu.memory_space<vmem>>, vector<2x128xf32>
    %c10 = arith.constant 10 : index
    %c128_36 = arith.constant 128 : index
    %96 = vector.load %arg5[%c10, %c128_36] : memref<16x256xf32, #tpu.memory_space<vmem>>, vector<2x128xf32>
    %97 = arith.truncf %77 : vector<2x32xf32> to vector<2x32xbf16>
    %cst_37 = arith.constant dense<0.000000e+00> : vector<2x128xf32>
    %98 = tpu.matmul %97, %3, %cst_37 {dimension_numbers = #tpu.dot_dimension_numbers<[1], [0], [0], [1], [0, 0, 1, 1], [], []>} : vector<2x32xbf16>, vector<32x128xbf16>, vector<2x128xf32> -> vector<2x128xf32>
    %99 = arith.addf %95, %98 : vector<2x128xf32>
    %100 = arith.truncf %92 : vector<2x32xf32> to vector<2x32xbf16>
    %cst_38 = arith.constant dense<0.000000e+00> : vector<2x128xf32>
    %101 = tpu.matmul %100, %5, %cst_38 {dimension_numbers = #tpu.dot_dimension_numbers<[1], [0], [0], [1], [0, 0, 1, 1], [], []>} : vector<2x32xbf16>, vector<32x128xbf16>, vector<2x128xf32> -> vector<2x128xf32>
    %102 = arith.addf %96, %101 : vector<2x128xf32>
    %103 = arith.negf %99 : vector<2x128xf32>
    %104 = math.exp %103 : vector<2x128xf32>
    %cst_39 = arith.constant 1.000000e+00 : f32
    %105 = vector.broadcast %cst_39 : f32 to vector<2x128xf32>
    %106 = arith.addf %105, %104 : vector<2x128xf32>
    %107 = arith.divf %105, %106 : vector<2x128xf32>
    %108 = vector.extract_strided_slice %107 {offsets = [0, 0], sizes = [2, 32], strides = [1, 1]} : vector<2x128xf32> to vector<2x32xf32>
    %109 = vector.extract_strided_slice %107 {offsets = [0, 32], sizes = [2, 32], strides = [1, 1]} : vector<2x128xf32> to vector<2x32xf32>
    %110 = vector.extract_strided_slice %107 {offsets = [0, 96], sizes = [2, 32], strides = [1, 1]} : vector<2x128xf32> to vector<2x32xf32>
    %111 = vector.extract_strided_slice %99 {offsets = [0, 64], sizes = [2, 32], strides = [1, 1]} : vector<2x128xf32> to vector<2x32xf32>
    %112 = math.tanh %111 : vector<2x32xf32>
    %113 = arith.mulf %109, %75 : vector<2x32xf32>
    %114 = arith.mulf %108, %112 : vector<2x32xf32>
    %115 = arith.addf %113, %114 : vector<2x32xf32>
    %116 = math.tanh %115 : vector<2x32xf32>
    %117 = arith.mulf %110, %116 : vector<2x32xf32>
    %118 = arith.negf %102 : vector<2x128xf32>
    %119 = math.exp %118 : vector<2x128xf32>
    %cst_40 = arith.constant 1.000000e+00 : f32
    %120 = vector.broadcast %cst_40 : f32 to vector<2x128xf32>
    %121 = arith.addf %120, %119 : vector<2x128xf32>
    %122 = arith.divf %120, %121 : vector<2x128xf32>
    %123 = vector.extract_strided_slice %122 {offsets = [0, 0], sizes = [2, 32], strides = [1, 1]} : vector<2x128xf32> to vector<2x32xf32>
    %124 = vector.extract_strided_slice %122 {offsets = [0, 32], sizes = [2, 32], strides = [1, 1]} : vector<2x128xf32> to vector<2x32xf32>
    %125 = vector.extract_strided_slice %122 {offsets = [0, 96], sizes = [2, 32], strides = [1, 1]} : vector<2x128xf32> to vector<2x32xf32>
    %126 = vector.extract_strided_slice %102 {offsets = [0, 64], sizes = [2, 32], strides = [1, 1]} : vector<2x128xf32> to vector<2x32xf32>
    %127 = math.tanh %126 : vector<2x32xf32>
    %128 = arith.mulf %124, %90 : vector<2x32xf32>
    %129 = arith.mulf %123, %127 : vector<2x32xf32>
    %130 = arith.addf %128, %129 : vector<2x32xf32>
    %131 = math.tanh %130 : vector<2x32xf32>
    %132 = arith.mulf %125, %131 : vector<2x32xf32>
    %c4_41 = arith.constant 4 : index
    %c0_42 = arith.constant 0 : index
    %133 = vector.load %arg4[%c4_41, %c0_42] : memref<16x64xf32, #tpu.memory_space<vmem>>, vector<2x32xf32>
    tpu.vector_store %arg4[%c4_41, %c0_42], %117 {strides = array<i32>} : memref<16x64xf32, #tpu.memory_space<vmem>>, vector<2x32xf32>,
    %c10_43 = arith.constant 10 : index
    %c32_44 = arith.constant 32 : index
    %134 = vector.load %arg4[%c10_43, %c32_44] : memref<16x64xf32, #tpu.memory_space<vmem>>, vector<2x32xf32>
    tpu.vector_store %arg4[%c10_43, %c32_44], %132 {strides = array<i32>} : memref<16x64xf32, #tpu.memory_space<vmem>>, vector<2x32xf32>,
    %c6 = arith.constant 6 : index
    %c0_45 = arith.constant 0 : index
    %135 = vector.load %arg5[%c6, %c0_45] : memref<16x256xf32, #tpu.memory_space<vmem>>, vector<2x128xf32>
    %c8 = arith.constant 8 : index
    %c128_46 = arith.constant 128 : index
    %136 = vector.load %arg5[%c8, %c128_46] : memref<16x256xf32, #tpu.memory_space<vmem>>, vector<2x128xf32>
    %137 = arith.truncf %117 : vector<2x32xf32> to vector<2x32xbf16>
    %cst_47 = arith.constant dense<0.000000e+00> : vector<2x128xf32>
    %138 = tpu.matmul %137, %3, %cst_47 {dimension_numbers = #tpu.dot_dimension_numbers<[1], [0], [0], [1], [0, 0, 1, 1], [], []>} : vector<2x32xbf16>, vector<32x128xbf16>, vector<2x128xf32> -> vector<2x128xf32>
    %139 = arith.addf %135, %138 : vector<2x128xf32>
    %140 = arith.truncf %132 : vector<2x32xf32> to vector<2x32xbf16>
    %cst_48 = arith.constant dense<0.000000e+00> : vector<2x128xf32>
    %141 = tpu.matmul %140, %5, %cst_48 {dimension_numbers = #tpu.dot_dimension_numbers<[1], [0], [0], [1], [0, 0, 1, 1], [], []>} : vector<2x32xbf16>, vector<32x128xbf16>, vector<2x128xf32> -> vector<2x128xf32>
    %142 = arith.addf %136, %141 : vector<2x128xf32>
    %143 = arith.negf %139 : vector<2x128xf32>
    %144 = math.exp %143 : vector<2x128xf32>
    %cst_49 = arith.constant 1.000000e+00 : f32
    %145 = vector.broadcast %cst_49 : f32 to vector<2x128xf32>
    %146 = arith.addf %145, %144 : vector<2x128xf32>
    %147 = arith.divf %145, %146 : vector<2x128xf32>
    %148 = vector.extract_strided_slice %147 {offsets = [0, 0], sizes = [2, 32], strides = [1, 1]} : vector<2x128xf32> to vector<2x32xf32>
    %149 = vector.extract_strided_slice %147 {offsets = [0, 32], sizes = [2, 32], strides = [1, 1]} : vector<2x128xf32> to vector<2x32xf32>
    %150 = vector.extract_strided_slice %147 {offsets = [0, 96], sizes = [2, 32], strides = [1, 1]} : vector<2x128xf32> to vector<2x32xf32>
    %151 = vector.extract_strided_slice %139 {offsets = [0, 64], sizes = [2, 32], strides = [1, 1]} : vector<2x128xf32> to vector<2x32xf32>
    %152 = math.tanh %151 : vector<2x32xf32>
    %153 = arith.mulf %149, %115 : vector<2x32xf32>
    %154 = arith.mulf %148, %152 : vector<2x32xf32>
    %155 = arith.addf %153, %154 : vector<2x32xf32>
    %156 = math.tanh %155 : vector<2x32xf32>
    %157 = arith.mulf %150, %156 : vector<2x32xf32>
    %158 = arith.negf %142 : vector<2x128xf32>
    %159 = math.exp %158 : vector<2x128xf32>
    %cst_50 = arith.constant 1.000000e+00 : f32
    %160 = vector.broadcast %cst_50 : f32 to vector<2x128xf32>
    %161 = arith.addf %160, %159 : vector<2x128xf32>
    %162 = arith.divf %160, %161 : vector<2x128xf32>
    %163 = vector.extract_strided_slice %162 {offsets = [0, 0], sizes = [2, 32], strides = [1, 1]} : vector<2x128xf32> to vector<2x32xf32>
    %164 = vector.extract_strided_slice %162 {offsets = [0, 32], sizes = [2, 32], strides = [1, 1]} : vector<2x128xf32> to vector<2x32xf32>
    %165 = vector.extract_strided_slice %162 {offsets = [0, 96], sizes = [2, 32], strides = [1, 1]} : vector<2x128xf32> to vector<2x32xf32>
    %166 = vector.extract_strided_slice %142 {offsets = [0, 64], sizes = [2, 32], strides = [1, 1]} : vector<2x128xf32> to vector<2x32xf32>
    %167 = math.tanh %166 : vector<2x32xf32>
    %168 = arith.mulf %164, %130 : vector<2x32xf32>
    %169 = arith.mulf %163, %167 : vector<2x32xf32>
    %170 = arith.addf %168, %169 : vector<2x32xf32>
    %171 = math.tanh %170 : vector<2x32xf32>
    %172 = arith.mulf %165, %171 : vector<2x32xf32>
    %c6_51 = arith.constant 6 : index
    %c0_52 = arith.constant 0 : index
    %173 = vector.load %arg4[%c6_51, %c0_52] : memref<16x64xf32, #tpu.memory_space<vmem>>, vector<2x32xf32>
    tpu.vector_store %arg4[%c6_51, %c0_52], %157 {strides = array<i32>} : memref<16x64xf32, #tpu.memory_space<vmem>>, vector<2x32xf32>,
    %c8_53 = arith.constant 8 : index
    %c32_54 = arith.constant 32 : index
    %174 = vector.load %arg4[%c8_53, %c32_54] : memref<16x64xf32, #tpu.memory_space<vmem>>, vector<2x32xf32>
    tpu.vector_store %arg4[%c8_53, %c32_54], %172 {strides = array<i32>} : memref<16x64xf32, #tpu.memory_space<vmem>>, vector<2x32xf32>,
    %c8_55 = arith.constant 8 : index
    %c0_56 = arith.constant 0 : index
    %175 = vector.load %arg5[%c8_55, %c0_56] : memref<16x256xf32, #tpu.memory_space<vmem>>, vector<2x128xf32>
    %c6_57 = arith.constant 6 : index
    %c128_58 = arith.constant 128 : index
    %176 = vector.load %arg5[%c6_57, %c128_58] : memref<16x256xf32, #tpu.memory_space<vmem>>, vector<2x128xf32>
    %177 = arith.truncf %157 : vector<2x32xf32> to vector<2x32xbf16>
    %cst_59 = arith.constant dense<0.000000e+00> : vector<2x128xf32>
    %178 = tpu.matmul %177, %3, %cst_59 {dimension_numbers = #tpu.dot_dimension_numbers<[1], [0], [0], [1], [0, 0, 1, 1], [], []>} : vector<2x32xbf16>, vector<32x128xbf16>, vector<2x128xf32> -> vector<2x128xf32>
    %179 = arith.addf %175, %178 : vector<2x128xf32>
    %180 = arith.truncf %172 : vector<2x32xf32> to vector<2x32xbf16>
    %cst_60 = arith.constant dense<0.000000e+00> : vector<2x128xf32>
    %181 = tpu.matmul %180, %5, %cst_60 {dimension_numbers = #tpu.dot_dimension_numbers<[1], [0], [0], [1], [0, 0, 1, 1], [], []>} : vector<2x32xbf16>, vector<32x128xbf16>, vector<2x128xf32> -> vector<2x128xf32>
    %182 = arith.addf %176, %181 : vector<2x128xf32>
    %183 = arith.negf %179 : vector<2x128xf32>
    %184 = math.exp %183 : vector<2x128xf32>
    %cst_61 = arith.constant 1.000000e+00 : f32
    %185 = vector.broadcast %cst_61 : f32 to vector<2x128xf32>
    %186 = arith.addf %185, %184 : vector<2x128xf32>
    %187 = arith.divf %185, %186 : vector<2x128xf32>
    %188 = vector.extract_strided_slice %187 {offsets = [0, 0], sizes = [2, 32], strides = [1, 1]} : vector<2x128xf32> to vector<2x32xf32>
    %189 = vector.extract_strided_slice %187 {offsets = [0, 32], sizes = [2, 32], strides = [1, 1]} : vector<2x128xf32> to vector<2x32xf32>
    %190 = vector.extract_strided_slice %187 {offsets = [0, 96], sizes = [2, 32], strides = [1, 1]} : vector<2x128xf32> to vector<2x32xf32>
    %191 = vector.extract_strided_slice %179 {offsets = [0, 64], sizes = [2, 32], strides = [1, 1]} : vector<2x128xf32> to vector<2x32xf32>
    %192 = math.tanh %191 : vector<2x32xf32>
    %193 = arith.mulf %189, %155 : vector<2x32xf32>
    %194 = arith.mulf %188, %192 : vector<2x32xf32>
    %195 = arith.addf %193, %194 : vector<2x32xf32>
    %196 = math.tanh %195 : vector<2x32xf32>
    %197 = arith.mulf %190, %196 : vector<2x32xf32>
    %198 = arith.negf %182 : vector<2x128xf32>
    %199 = math.exp %198 : vector<2x128xf32>
    %cst_62 = arith.constant 1.000000e+00 : f32
    %200 = vector.broadcast %cst_62 : f32 to vector<2x128xf32>
    %201 = arith.addf %200, %199 : vector<2x128xf32>
    %202 = arith.divf %200, %201 : vector<2x128xf32>
    %203 = vector.extract_strided_slice %202 {offsets = [0, 0], sizes = [2, 32], strides = [1, 1]} : vector<2x128xf32> to vector<2x32xf32>
    %204 = vector.extract_strided_slice %202 {offsets = [0, 32], sizes = [2, 32], strides = [1, 1]} : vector<2x128xf32> to vector<2x32xf32>
    %205 = vector.extract_strided_slice %202 {offsets = [0, 96], sizes = [2, 32], strides = [1, 1]} : vector<2x128xf32> to vector<2x32xf32>
    %206 = vector.extract_strided_slice %182 {offsets = [0, 64], sizes = [2, 32], strides = [1, 1]} : vector<2x128xf32> to vector<2x32xf32>
    %207 = math.tanh %206 : vector<2x32xf32>
    %208 = arith.mulf %204, %170 : vector<2x32xf32>
    %209 = arith.mulf %203, %207 : vector<2x32xf32>
    %210 = arith.addf %208, %209 : vector<2x32xf32>
    %211 = math.tanh %210 : vector<2x32xf32>
    %212 = arith.mulf %205, %211 : vector<2x32xf32>
    %c8_63 = arith.constant 8 : index
    %c0_64 = arith.constant 0 : index
    %213 = vector.load %arg4[%c8_63, %c0_64] : memref<16x64xf32, #tpu.memory_space<vmem>>, vector<2x32xf32>
    tpu.vector_store %arg4[%c8_63, %c0_64], %197 {strides = array<i32>} : memref<16x64xf32, #tpu.memory_space<vmem>>, vector<2x32xf32>,
    %c6_65 = arith.constant 6 : index
    %c32_66 = arith.constant 32 : index
    %214 = vector.load %arg4[%c6_65, %c32_66] : memref<16x64xf32, #tpu.memory_space<vmem>>, vector<2x32xf32>
    tpu.vector_store %arg4[%c6_65, %c32_66], %212 {strides = array<i32>} : memref<16x64xf32, #tpu.memory_space<vmem>>, vector<2x32xf32>,
    %c10_67 = arith.constant 10 : index
    %c0_68 = arith.constant 0 : index
    %215 = vector.load %arg5[%c10_67, %c0_68] : memref<16x256xf32, #tpu.memory_space<vmem>>, vector<2x128xf32>
    %c4_69 = arith.constant 4 : index
    %c128_70 = arith.constant 128 : index
    %216 = vector.load %arg5[%c4_69, %c128_70] : memref<16x256xf32, #tpu.memory_space<vmem>>, vector<2x128xf32>
    %217 = arith.truncf %197 : vector<2x32xf32> to vector<2x32xbf16>
    %cst_71 = arith.constant dense<0.000000e+00> : vector<2x128xf32>
    %218 = tpu.matmul %217, %3, %cst_71 {dimension_numbers = #tpu.dot_dimension_numbers<[1], [0], [0], [1], [0, 0, 1, 1], [], []>} : vector<2x32xbf16>, vector<32x128xbf16>, vector<2x128xf32> -> vector<2x128xf32>
    %219 = arith.addf %215, %218 : vector<2x128xf32>
    %220 = arith.truncf %212 : vector<2x32xf32> to vector<2x32xbf16>
    %cst_72 = arith.constant dense<0.000000e+00> : vector<2x128xf32>
    %221 = tpu.matmul %220, %5, %cst_72 {dimension_numbers = #tpu.dot_dimension_numbers<[1], [0], [0], [1], [0, 0, 1, 1], [], []>} : vector<2x32xbf16>, vector<32x128xbf16>, vector<2x128xf32> -> vector<2x128xf32>
    %222 = arith.addf %216, %221 : vector<2x128xf32>
    %223 = arith.negf %219 : vector<2x128xf32>
    %224 = math.exp %223 : vector<2x128xf32>
    %cst_73 = arith.constant 1.000000e+00 : f32
    %225 = vector.broadcast %cst_73 : f32 to vector<2x128xf32>
    %226 = arith.addf %225, %224 : vector<2x128xf32>
    %227 = arith.divf %225, %226 : vector<2x128xf32>
    %228 = vector.extract_strided_slice %227 {offsets = [0, 0], sizes = [2, 32], strides = [1, 1]} : vector<2x128xf32> to vector<2x32xf32>
    %229 = vector.extract_strided_slice %227 {offsets = [0, 32], sizes = [2, 32], strides = [1, 1]} : vector<2x128xf32> to vector<2x32xf32>
    %230 = vector.extract_strided_slice %227 {offsets = [0, 96], sizes = [2, 32], strides = [1, 1]} : vector<2x128xf32> to vector<2x32xf32>
    %231 = vector.extract_strided_slice %219 {offsets = [0, 64], sizes = [2, 32], strides = [1, 1]} : vector<2x128xf32> to vector<2x32xf32>
    %232 = math.tanh %231 : vector<2x32xf32>
    %233 = arith.mulf %229, %195 : vector<2x32xf32>
    %234 = arith.mulf %228, %232 : vector<2x32xf32>
    %235 = arith.addf %233, %234 : vector<2x32xf32>
    %236 = math.tanh %235 : vector<2x32xf32>
    %237 = arith.mulf %230, %236 : vector<2x32xf32>
    %238 = arith.negf %222 : vector<2x128xf32>
    %239 = math.exp %238 : vector<2x128xf32>
    %cst_74 = arith.constant 1.000000e+00 : f32
    %240 = vector.broadcast %cst_74 : f32 to vector<2x128xf32>
    %241 = arith.addf %240, %239 : vector<2x128xf32>
    %242 = arith.divf %240, %241 : vector<2x128xf32>
    %243 = vector.extract_strided_slice %242 {offsets = [0, 0], sizes = [2, 32], strides = [1, 1]} : vector<2x128xf32> to vector<2x32xf32>
    %244 = vector.extract_strided_slice %242 {offsets = [0, 32], sizes = [2, 32], strides = [1, 1]} : vector<2x128xf32> to vector<2x32xf32>
    %245 = vector.extract_strided_slice %242 {offsets = [0, 96], sizes = [2, 32], strides = [1, 1]} : vector<2x128xf32> to vector<2x32xf32>
    %246 = vector.extract_strided_slice %222 {offsets = [0, 64], sizes = [2, 32], strides = [1, 1]} : vector<2x128xf32> to vector<2x32xf32>
    %247 = math.tanh %246 : vector<2x32xf32>
    %248 = arith.mulf %244, %210 : vector<2x32xf32>
    %249 = arith.mulf %243, %247 : vector<2x32xf32>
    %250 = arith.addf %248, %249 : vector<2x32xf32>
    %251 = math.tanh %250 : vector<2x32xf32>
    %252 = arith.mulf %245, %251 : vector<2x32xf32>
    %c10_75 = arith.constant 10 : index
    %c0_76 = arith.constant 0 : index
    %253 = vector.load %arg4[%c10_75, %c0_76] : memref<16x64xf32, #tpu.memory_space<vmem>>, vector<2x32xf32>
    tpu.vector_store %arg4[%c10_75, %c0_76], %237 {strides = array<i32>} : memref<16x64xf32, #tpu.memory_space<vmem>>, vector<2x32xf32>,
    %c4_77 = arith.constant 4 : index
    %c32_78 = arith.constant 32 : index
    %254 = vector.load %arg4[%c4_77, %c32_78] : memref<16x64xf32, #tpu.memory_space<vmem>>, vector<2x32xf32>
    tpu.vector_store %arg4[%c4_77, %c32_78], %252 {strides = array<i32>} : memref<16x64xf32, #tpu.memory_space<vmem>>, vector<2x32xf32>,
    %c12_79 = arith.constant 12 : index
    %c0_80 = arith.constant 0 : index
    %255 = vector.load %arg5[%c12_79, %c0_80] : memref<16x256xf32, #tpu.memory_space<vmem>>, vector<2x128xf32>
    %c2_81 = arith.constant 2 : index
    %c128_82 = arith.constant 128 : index
    %256 = vector.load %arg5[%c2_81, %c128_82] : memref<16x256xf32, #tpu.memory_space<vmem>>, vector<2x128xf32>
    %257 = arith.truncf %237 : vector<2x32xf32> to vector<2x32xbf16>
    %cst_83 = arith.constant dense<0.000000e+00> : vector<2x128xf32>
    %258 = tpu.matmul %257, %3, %cst_83 {dimension_numbers = #tpu.dot_dimension_numbers<[1], [0], [0], [1], [0, 0, 1, 1], [], []>} : vector<2x32xbf16>, vector<32x128xbf16>, vector<2x128xf32> -> vector<2x128xf32>
    %259 = arith.addf %255, %258 : vector<2x128xf32>
    %260 = arith.truncf %252 : vector<2x32xf32> to vector<2x32xbf16>
    %cst_84 = arith.constant dense<0.000000e+00> : vector<2x128xf32>
    %261 = tpu.matmul %260, %5, %cst_84 {dimension_numbers = #tpu.dot_dimension_numbers<[1], [0], [0], [1], [0, 0, 1, 1], [], []>} : vector<2x32xbf16>, vector<32x128xbf16>, vector<2x128xf32> -> vector<2x128xf32>
    %262 = arith.addf %256, %261 : vector<2x128xf32>
    %263 = arith.negf %259 : vector<2x128xf32>
    %264 = math.exp %263 : vector<2x128xf32>
    %cst_85 = arith.constant 1.000000e+00 : f32
    %265 = vector.broadcast %cst_85 : f32 to vector<2x128xf32>
    %266 = arith.addf %265, %264 : vector<2x128xf32>
    %267 = arith.divf %265, %266 : vector<2x128xf32>
    %268 = vector.extract_strided_slice %267 {offsets = [0, 0], sizes = [2, 32], strides = [1, 1]} : vector<2x128xf32> to vector<2x32xf32>
    %269 = vector.extract_strided_slice %267 {offsets = [0, 32], sizes = [2, 32], strides = [1, 1]} : vector<2x128xf32> to vector<2x32xf32>
    %270 = vector.extract_strided_slice %267 {offsets = [0, 96], sizes = [2, 32], strides = [1, 1]} : vector<2x128xf32> to vector<2x32xf32>
    %271 = vector.extract_strided_slice %259 {offsets = [0, 64], sizes = [2, 32], strides = [1, 1]} : vector<2x128xf32> to vector<2x32xf32>
    %272 = math.tanh %271 : vector<2x32xf32>
    %273 = arith.mulf %269, %235 : vector<2x32xf32>
    %274 = arith.mulf %268, %272 : vector<2x32xf32>
    %275 = arith.addf %273, %274 : vector<2x32xf32>
    %276 = math.tanh %275 : vector<2x32xf32>
    %277 = arith.mulf %270, %276 : vector<2x32xf32>
    %278 = arith.negf %262 : vector<2x128xf32>
    %279 = math.exp %278 : vector<2x128xf32>
    %cst_86 = arith.constant 1.000000e+00 : f32
    %280 = vector.broadcast %cst_86 : f32 to vector<2x128xf32>
    %281 = arith.addf %280, %279 : vector<2x128xf32>
    %282 = arith.divf %280, %281 : vector<2x128xf32>
    %283 = vector.extract_strided_slice %282 {offsets = [0, 0], sizes = [2, 32], strides = [1, 1]} : vector<2x128xf32> to vector<2x32xf32>
    %284 = vector.extract_strided_slice %282 {offsets = [0, 32], sizes = [2, 32], strides = [1, 1]} : vector<2x128xf32> to vector<2x32xf32>
    %285 = vector.extract_strided_slice %282 {offsets = [0, 96], sizes = [2, 32], strides = [1, 1]} : vector<2x128xf32> to vector<2x32xf32>
    %286 = vector.extract_strided_slice %262 {offsets = [0, 64], sizes = [2, 32], strides = [1, 1]} : vector<2x128xf32> to vector<2x32xf32>
    %287 = math.tanh %286 : vector<2x32xf32>
    %288 = arith.mulf %284, %250 : vector<2x32xf32>
    %289 = arith.mulf %283, %287 : vector<2x32xf32>
    %290 = arith.addf %288, %289 : vector<2x32xf32>
    %291 = math.tanh %290 : vector<2x32xf32>
    %292 = arith.mulf %285, %291 : vector<2x32xf32>
    %c12_87 = arith.constant 12 : index
    %c0_88 = arith.constant 0 : index
    %293 = vector.load %arg4[%c12_87, %c0_88] : memref<16x64xf32, #tpu.memory_space<vmem>>, vector<2x32xf32>
    tpu.vector_store %arg4[%c12_87, %c0_88], %277 {strides = array<i32>} : memref<16x64xf32, #tpu.memory_space<vmem>>, vector<2x32xf32>,
    %c2_89 = arith.constant 2 : index
    %c32_90 = arith.constant 32 : index
    %294 = vector.load %arg4[%c2_89, %c32_90] : memref<16x64xf32, #tpu.memory_space<vmem>>, vector<2x32xf32>
    tpu.vector_store %arg4[%c2_89, %c32_90], %292 {strides = array<i32>} : memref<16x64xf32, #tpu.memory_space<vmem>>, vector<2x32xf32>,
    %c14_91 = arith.constant 14 : index
    %c0_92 = arith.constant 0 : index
    %295 = vector.load %arg5[%c14_91, %c0_92] : memref<16x256xf32, #tpu.memory_space<vmem>>, vector<2x128xf32>
    %c0_93 = arith.constant 0 : index
    %c128_94 = arith.constant 128 : index
    %296 = vector.load %arg5[%c0_93, %c128_94] : memref<16x256xf32, #tpu.memory_space<vmem>>, vector<2x128xf32>
    %297 = arith.truncf %277 : vector<2x32xf32> to vector<2x32xbf16>
    %cst_95 = arith.constant dense<0.000000e+00> : vector<2x128xf32>
    %298 = tpu.matmul %297, %3, %cst_95 {dimension_numbers = #tpu.dot_dimension_numbers<[1], [0], [0], [1], [0, 0, 1, 1], [], []>} : vector<2x32xbf16>, vector<32x128xbf16>, vector<2x128xf32> -> vector<2x128xf32>
    %299 = arith.addf %295, %298 : vector<2x128xf32>
    %300 = arith.truncf %292 : vector<2x32xf32> to vector<2x32xbf16>
    %cst_96 = arith.constant dense<0.000000e+00> : vector<2x128xf32>
    %301 = tpu.matmul %300, %5, %cst_96 {dimension_numbers = #tpu.dot_dimension_numbers<[1], [0], [0], [1], [0, 0, 1, 1], [], []>} : vector<2x32xbf16>, vector<32x128xbf16>, vector<2x128xf32> -> vector<2x128xf32>
    %302 = arith.addf %296, %301 : vector<2x128xf32>
    %303 = arith.negf %299 : vector<2x128xf32>
    %304 = math.exp %303 : vector<2x128xf32>
    %cst_97 = arith.constant 1.000000e+00 : f32
    %305 = vector.broadcast %cst_97 : f32 to vector<2x128xf32>
    %306 = arith.addf %305, %304 : vector<2x128xf32>
    %307 = arith.divf %305, %306 : vector<2x128xf32>
    %308 = vector.extract_strided_slice %307 {offsets = [0, 0], sizes = [2, 32], strides = [1, 1]} : vector<2x128xf32> to vector<2x32xf32>
    %309 = vector.extract_strided_slice %307 {offsets = [0, 32], sizes = [2, 32], strides = [1, 1]} : vector<2x128xf32> to vector<2x32xf32>
    %310 = vector.extract_strided_slice %307 {offsets = [0, 96], sizes = [2, 32], strides = [1, 1]} : vector<2x128xf32> to vector<2x32xf32>
    %311 = vector.extract_strided_slice %299 {offsets = [0, 64], sizes = [2, 32], strides = [1, 1]} : vector<2x128xf32> to vector<2x32xf32>
    %312 = math.tanh %311 : vector<2x32xf32>
    %313 = arith.mulf %309, %275 : vector<2x32xf32>
    %314 = arith.mulf %308, %312 : vector<2x32xf32>
    %315 = arith.addf %313, %314 : vector<2x32xf32>
    %316 = math.tanh %315 : vector<2x32xf32>
    %317 = arith.mulf %310, %316 : vector<2x32xf32>
    %318 = arith.negf %302 : vector<2x128xf32>
    %319 = math.exp %318 : vector<2x128xf32>
    %cst_98 = arith.constant 1.000000e+00 : f32
    %320 = vector.broadcast %cst_98 : f32 to vector<2x128xf32>
    %321 = arith.addf %320, %319 : vector<2x128xf32>
    %322 = arith.divf %320, %321 : vector<2x128xf32>
    %323 = vector.extract_strided_slice %322 {offsets = [0, 0], sizes = [2, 32], strides = [1, 1]} : vector<2x128xf32> to vector<2x32xf32>
    %324 = vector.extract_strided_slice %322 {offsets = [0, 32], sizes = [2, 32], strides = [1, 1]} : vector<2x128xf32> to vector<2x32xf32>
    %325 = vector.extract_strided_slice %322 {offsets = [0, 96], sizes = [2, 32], strides = [1, 1]} : vector<2x128xf32> to vector<2x32xf32>
    %326 = vector.extract_strided_slice %302 {offsets = [0, 64], sizes = [2, 32], strides = [1, 1]} : vector<2x128xf32> to vector<2x32xf32>
    %327 = math.tanh %326 : vector<2x32xf32>
    %328 = arith.mulf %324, %290 : vector<2x32xf32>
    %329 = arith.mulf %323, %327 : vector<2x32xf32>
    %330 = arith.addf %328, %329 : vector<2x32xf32>
    %331 = math.tanh %330 : vector<2x32xf32>
    %332 = arith.mulf %325, %331 : vector<2x32xf32>
    %c14_99 = arith.constant 14 : index
    %c0_100 = arith.constant 0 : index
    %333 = vector.load %arg4[%c14_99, %c0_100] : memref<16x64xf32, #tpu.memory_space<vmem>>, vector<2x32xf32>
    tpu.vector_store %arg4[%c14_99, %c0_100], %317 {strides = array<i32>} : memref<16x64xf32, #tpu.memory_space<vmem>>, vector<2x32xf32>,
    %c0_101 = arith.constant 0 : index
    %c32_102 = arith.constant 32 : index
    %334 = vector.load %arg4[%c0_101, %c32_102] : memref<16x64xf32, #tpu.memory_space<vmem>>, vector<2x32xf32>
    tpu.vector_store %arg4[%c0_101, %c32_102], %332 {strides = array<i32>} : memref<16x64xf32, #tpu.memory_space<vmem>>, vector<2x32xf32>,
    return
  }
}

</mosaic_0001>

<llo_original>
// kernel: tpu_custom_call.1
$region0: #{tpu_custom_call.1}
  #allocation0 [shape = 'u32[]', space=smem, size = 0x4, offset = 0x4, fixed_abs, tag = 'smem constant byte address 0x4 - core index']
  #allocation1 [shape = 'u32[144,128]{1,0:T(1,128)}', space=vmem, size = 0x12000, scoped, tag = 'internal scratch']
  #allocation2 [shape = 'f32[16,256]{1,0:T(8,128)}', space=vmem, size = 0x4000, scoped, tag = 'scratch operand']
  %s0 = inlined_call_operand.hbm [shape: bf16[16,32], index: 0, kind: input, shape index: {}]
  %s1 = inlined_call_operand.hbm [shape: bf16[32,256], index: 1, kind: input, shape index: {}]
  %s2 = inlined_call_operand.hbm [shape: bf16[2,32,128], index: 2, kind: input, shape index: {}]
  %s3 = inlined_call_operand.vmem [shape: f32[1,256], index: 3, kind: input, shape index: {}]
  %s4 = inlined_call_operand.hbm [shape: f32[16,64], index: 4, kind: output, shape index: {}]
  %s5 = sld [smem:[#allocation0]]
  $region38: #{tpu_custom_call.1} parent=0
    _
  %s7 = ssub.s32 1, %s5
  %s8 = scalar_select 0, %s7, %s5
  $region1: #{tpu_custom_call.1} parent=0
    #allocation3 [shape = 'u8[4096]{0}', space=vmem, size = 0x1000, scoped, tag = 'input window, operand 0, single buffered']
    #allocation4 [shape = 's32[1]{0}', space=sflag, size = 0x4, scoped, tag = 'scoped memory for tpu_custom_call.1']
    #allocation5 [shape = 's32[1]{0}', space=sflag, size = 0x4, scoped, tag = 'scoped memory for tpu_custom_call.1']
    #allocation6 [shape = 'u8[16384]{0}', space=vmem, size = 0x4000, scoped, tag = 'input window, operand 1, single buffered']
    #allocation7 [shape = 's32[1]{0}', space=sflag, size = 0x4, scoped, tag = 'scoped memory for tpu_custom_call.1']
    #allocation8 [shape = 'u8[16384]{0}', space=vmem, size = 0x4000, scoped, tag = 'input window, operand 2, single buffered']
    #allocation9 [shape = 'u8[8192]{0}', space=vmem, size = 0x2000, scoped, tag = 'output window, operand 0, single buffered']
    %9 = vsyncpa [#allocation4], 0
    %10 = vsyncpa [#allocation7], 0
    %11 = vsyncpa [#allocation5], 0
    // Predicated region
    $region2: #{tpu_custom_call.1} parent=1 // pred_check
      _
    $region3: #{tpu_custom_call.1} parent=1 // pred_check_branch
      %13 = sbr.rel (0) target = $region5
    $region4: #{tpu_custom_call.1} parent=1 // pred_region
      %s15 = ssub.s32 128, 128
      %16 = vsyncadd [#allocation4], %s15
      %s17 = sshll.u32 [#allocation3], 4
      %s18 = int_to_ptr.vmem [resolvable:$true] %s17
      %23 = dma.hbm_to_vmem [thread:$0]  %s0, 128, %s18, [#allocation4], 64, 64, 4
    $region5: #{tpu_custom_call.1} parent=1 // pred_fallthru
      _
    // Predicated region
    $region6: #{tpu_custom_call.1} parent=1 // pred_check
      _
    $region7: #{tpu_custom_call.1} parent=1 // pred_check_branch
      %25 = sbr.rel (0) target = $region9
    $region8: #{tpu_custom_call.1} parent=1 // pred_region
      %s27 = ssub.s32 512, 512
      %28 = vsyncadd [#allocation7], %s27
      %s29 = sshll.u32 [#allocation6], 4
      %s30 = int_to_ptr.vmem [resolvable:$true] %s29
      %35 = dma.hbm_to_vmem [thread:$0]  %s1, 512, %s30, [#allocation7], 128, 128, 8
    $region9: #{tpu_custom_call.1} parent=1 // pred_fallthru
      _
    // Predicated region
    $region10: #{tpu_custom_call.1} parent=1 // pred_check
      _
    $region11: #{tpu_custom_call.1} parent=1 // pred_check_branch
      %37 = sbr.rel (0) target = $region13
    $region12: #{tpu_custom_call.1} parent=1 // pred_region
      %s39 = ssub.s32 512, 512
      %40 = vsyncadd [#allocation7], %s39
      %s41 = sshll.u32 [#allocation8], 4
      %s42 = int_to_ptr.vmem [resolvable:$true] %s41
      %47 = dma.hbm_to_vmem [thread:$0]  %s2, 512, %s42, [#allocation7], 64, 64, 4
    $region13: #{tpu_custom_call.1} parent=1 // pred_fallthru
      _
    // Predicated region
    $region14: #{tpu_custom_call.1} parent=1 // pred_check
      _
    $region15: #{tpu_custom_call.1} parent=1 // pred_check_branch
      %49 = sbr.rel (0) target = $region17
    $region16: #{tpu_custom_call.1} parent=1 // pred_region
      _
    $region17: #{tpu_custom_call.1} parent=1 // pred_fallthru
      _
    // Predicated region
    $region18: #{tpu_custom_call.1} parent=1 // pred_check
      _
    $region19: #{tpu_custom_call.1} parent=1 // pred_check_branch
      %51 = sbr.rel (0) target = $region21
    $region20: #{tpu_custom_call.1} parent=1 // pred_region
      %52 = dma.done [#allocation4], 128
    $region21: #{tpu_custom_call.1} parent=1 // pred_fallthru
      _
    // Predicated region
    $region22: #{tpu_custom_call.1} parent=1 // pred_check
      _
    $region23: #{tpu_custom_call.1} parent=1 // pred_check_branch
      %54 = sbr.rel (0) target = $region25
    $region24: #{tpu_custom_call.1} parent=1 // pred_region
      %55 = dma.done [#allocation7], 512
    $region25: #{tpu_custom_call.1} parent=1 // pred_fallthru
      _
    // Predicated region
    $region26: #{tpu_custom_call.1} parent=1 // pred_check
      _
    $region27: #{tpu_custom_call.1} parent=1 // pred_check_branch
      %57 = sbr.rel (0) target = $region29
    $region28: #{tpu_custom_call.1} parent=1 // pred_region
      %58 = dma.done [#allocation7], 512
    $region29: #{tpu_custom_call.1} parent=1 // pred_fallthru
      _
    %v60 = vld [vmem:[#allocation6] sm:$0xff]
    %v61 = vld [vmem:[#allocation6 + $0x8] sm:$0xff]
    %v62 = vld [vmem:[#allocation6 + $0x10] sm:$0xff]
    %v63 = vld [vmem:[#allocation6 + $0x18] sm:$0xff]
    %v64 = vld [vmem:[%s3] sm:$0x3]
    %v65 = vld [vmem:[#allocation8] sm:$0xf]
    %v66 = vld [vmem:[#allocation8 + $0x4] sm:$0xf]
    %v67 = vld [vmem:[#allocation8 + $0x8] sm:$0xf]
    %v68 = vld [vmem:[#allocation8 + $0xc] sm:$0xf]
    %s69 = scalar_lea.vmem [#allocation8], 16
    %v70 = vld [vmem:[%s69] sm:$0xf]
    %v71 = vld [vmem:[%s69 + $0x4] sm:$0xf]
    %v72 = vld [vmem:[%s69 + $0x8] sm:$0xf]
    %v73 = vld [vmem:[%s69 + $0xc] sm:$0xf]
    %v74 = vld [vmem:[#allocation3] sm:$0xf]
    %v75 = vld [vmem:[#allocation3 + $0x4] sm:$0xf]
    %v77 = vlaneseq
    %v78 = vshrl.u32 %v77, 7
    %v79 = vsub.s32 0, %v78
    %v80 = vrot.slane %v64, %v79
    %v81 = vlaneseq
    %v82 = vshrl.u32 %v81, 7
    %v83 = vsub.s32 1, %v82
    %v84 = vrot.slane %v64, %v83
    %v89 = vunpack.c.l.b16 %v74
    %v90 = vunpack.c.l.b16 %v75
    %v91 = vpack.c.b16 %v90, %v89
    %v96 = vunpack.c.l.b16 %v60
    %v97 = vunpack.c.h.b16 %v60
    %v98 = vunpack.c.l.b16 %v61
    %v99 = vunpack.c.h.b16 %v61
    %v100 = vunpack.c.l.b16 %v62
    %v101 = vunpack.c.h.b16 %v62
    %v102 = vunpack.c.l.b16 %v63
    %v103 = vunpack.c.h.b16 %v63
    %v104 = vpack.c.b16 %v98, %v96
    %v105 = vpack.c.b16 %v99, %v97
    %v106 = vpack.c.b16 %v102, %v100
    %v107 = vpack.c.b16 %v103, %v101
    %vm112 = vcmask 261120
    %v114 = vsel %vm112, %v91, 0
    %116 = vmatprep.subr.bf16.mxu0 %v105
    %117 = vmatpush1.bf16.msra.mxu0 %v104
    %118 = vmatprep.subr.bf16.mxu0 %v107
    %119 = vmatpush1.bf16.msra.mxu0 %v106
    %120 = vmatprep.subr.bf16.mxu0 0
    %121 = vmatpush1.bf16.msra.mxu0 0
    %122 = vmatprep.subr.bf16.mxu0 0
    %123 = vmatpush1.bf16.msra.mxu0 0
    %124 = vmatprep.subr.bf16.mxu0 0
    %125 = vmatpush1.bf16.msra.mxu0 0
    %126 = vmatprep.subr.bf16.mxu0 0
    %127 = vmatpush1.bf16.msra.mxu0 0
    %128 = vmatprep.subr.bf16.mxu0 0
    %129 = vmatpush1.bf16.msra.mxu0 0
    %130 = vmatprep.subr.bf16.mxu0 0
    %131 = vmatpush1.bf16.msra.mxu0 0
    %132 = vmatprep.subr.bf16.mxu0 0
    %133 = vmatpush1.bf16.msra.mxu0 0
    %134 = vmatprep.subr.bf16.mxu0 0
    %135 = vmatpush1.bf16.msra.mxu0 0
    %136 = vmatprep.subr.bf16.mxu0 0
    %137 = vmatpush1.bf16.msra.mxu0 0
    %138 = vmatprep.subr.bf16.mxu0 0
    %139 = vmatpush1.bf16.msra.mxu0 0
    %140 = vmatprep.subr.bf16.mxu0 0
    %141 = vmatpush1.bf16.msra.mxu0 0
    %142 = vmatprep.subr.bf16.mxu0 0
    %143 = vmatpush1.bf16.msra.mxu0 0
    %144 = vmatprep.subr.bf16.mxu0 0
    %145 = vmatpush1.bf16.msra.mxu0 0
    %146 = vmatprep.subr.bf16.mxu0 0
    %147 = vmatpush1.bf16.msra.mxu0 0
    %148 = vmatprep.mubr.bf16.mxu0 0
    %149 = vmatmul.mubr.bf16.gmra.mrb[0].mxu0 %v114
    %v150 = vpop.f32.mrb[0].mxu0
    %v151 = vadd.f32 %v80, %v150
    %v152 = vpop.f32.mrb[0].mxu0
    %v153 = vadd.f32 %v84, %v152
    %v154 = vpop.f32.mrb[0].mxu0
    %v155 = vadd.f32 %v80, %v154
    %v156 = vpop.f32.mrb[0].mxu0
    %v157 = vadd.f32 %v84, %v156
    %158 = vdwg.mxu0
    %159 = vst [vmem:[#allocation2] sm:$0xff] %v151
    %160 = vst [vmem:[#allocation2 + $0x8] sm:$0xff] %v153
    %161 = vst [vmem:[#allocation2 + $0x10] sm:$0xff] %v155
    %162 = vst [vmem:[#allocation2 + $0x18] sm:$0xff] %v157
    %v163 = vld [vmem:[#allocation2] sm:$0x3]
    %v164 = vld [vmem:[#allocation2 + $0x18] sm:$0xc0]
    %v169 = vunpack.c.l.b16 %v65
    %v170 = vunpack.c.l.b16 %v66
    %v171 = vunpack.c.l.b16 %v67
    %v172 = vunpack.c.l.b16 %v68
    %v173 = vpack.c.b16 %v170, %v169
    %v174 = vpack.c.b16 %v172, %v171
    %v178 = vsel %vm112, 0, 0
    %180 = vmatprep.subr.bf16.mxu0 0
    %181 = vmatpush1.bf16.msra.mxu0 %v173
    %182 = vmatprep.subr.bf16.mxu0 0
    %183 = vmatpush1.bf16.msra.mxu0 %v174
    %184 = vmatprep.subr.bf16.mxu0 0
    %185 = vmatpush1.bf16.msra.mxu0 0
    %186 = vmatprep.subr.bf16.mxu0 0
    %187 = vmatpush1.bf16.msra.mxu0 0
    %188 = vmatprep.subr.bf16.mxu0 0
    %189 = vmatpush1.bf16.msra.mxu0 0
    %190 = vmatprep.subr.bf16.mxu0 0
    %191 = vmatpush1.bf16.msra.mxu0 0
    %192 = vmatprep.subr.bf16.mxu0 0
    %193 = vmatpush1.bf16.msra.mxu0 0
    %194 = vmatprep.subr.bf16.mxu0 0
    %195 = vmatpush1.bf16.msra.mxu0 0
    %196 = vmatprep.subr.bf16.mxu0 0
    %197 = vmatpush1.bf16.msra.mxu0 0
    %198 = vmatprep.subr.bf16.mxu0 0
    %199 = vmatpush1.bf16.msra.mxu0 0
    %200 = vmatprep.subr.bf16.mxu0 0
    %201 = vmatpush1.bf16.msra.mxu0 0
    %202 = vmatprep.subr.bf16.mxu0 0
    %203 = vmatpush1.bf16.msra.mxu0 0
    %204 = vmatprep.subr.bf16.mxu0 0
    %205 = vmatpush1.bf16.msra.mxu0 0
    %206 = vmatprep.subr.bf16.mxu0 0
    %207 = vmatpush1.bf16.msra.mxu0 0
    %208 = vmatprep.subr.bf16.mxu0 0
    %209 = vmatpush1.bf16.msra.mxu0 0
    %210 = vmatprep.subr.bf16.mxu0 0
    %211 = vmatpush1.bf16.msra.mxu0 0
    %212 = vmatprep.mubr.bf16.mxu0 0
    %213 = vmatmul.mubr.bf16.gmra.mrb[0].mxu0 %v178
    %v214 = vpop.f32.mrb[0].mxu0
    %v215 = vadd.f32 0.0, %v214
    %v216 = vpop.f32.mrb[0].mxu0
    %v217 = vpop.f32.mrb[0].mxu0
    %v218 = vpop.f32.mrb[0].mxu0
    %219 = vdwg.mxu0
    %v220 = vadd.f32 %v163, %v215
    %v225 = vunpack.c.l.b16 %v70
    %v226 = vunpack.c.l.b16 %v71
    %v227 = vunpack.c.l.b16 %v72
    %v228 = vunpack.c.l.b16 %v73
    %v229 = vpack.c.b16 %v226, %v225
    %v230 = vpack.c.b16 %v228, %v227
    %233 = vmatprep.subr.bf16.mxu0 0
    %234 = vmatpush1.bf16.msra.mxu0 %v229
    %235 = vmatprep.subr.bf16.mxu0 0
    %236 = vmatpush1.bf16.msra.mxu0 %v230
    %237 = vmatprep.subr.bf16.mxu0 0
    %238 = vmatpush1.bf16.msra.mxu0 0
    %239 = vmatprep.subr.bf16.mxu0 0
    %240 = vmatpush1.bf16.msra.mxu0 0
    %241 = vmatprep.subr.bf16.mxu0 0
    %242 = vmatpush1.bf16.msra.mxu0 0
    %243 = vmatprep.subr.bf16.mxu0 0
    %244 = vmatpush1.bf16.msra.mxu0 0
    %245 = vmatprep.subr.bf16.mxu0 0
    %246 = vmatpush1.bf16.msra.mxu0 0
    %247 = vmatprep.subr.bf16.mxu0 0
    %248 = vmatpush1.bf16.msra.mxu0 0
    %249 = vmatprep.subr.bf16.mxu0 0
    %250 = vmatpush1.bf16.msra.mxu0 0
    %251 = vmatprep.subr.bf16.mxu0 0
    %252 = vmatpush1.bf16.msra.mxu0 0
    %253 = vmatprep.subr.bf16.mxu0 0
    %254 = vmatpush1.bf16.msra.mxu0 0
    %255 = vmatprep.subr.bf16.mxu0 0
    %256 = vmatpush1.bf16.msra.mxu0 0
    %257 = vmatprep.subr.bf16.mxu0 0
    %258 = vmatpush1.bf16.msra.mxu0 0
    %259 = vmatprep.subr.bf16.mxu0 0
    %260 = vmatpush1.bf16.msra.mxu0 0
    %261 = vmatprep.subr.bf16.mxu0 0
    %262 = vmatpush1.bf16.msra.mxu0 0
    %263 = vmatprep.subr.bf16.mxu0 0
    %264 = vmatpush1.bf16.msra.mxu0 0
    %265 = vmatprep.mubr.bf16.mxu0 0
    %266 = vmatmul.mubr.bf16.gmra.mrb[0].mxu0 %v178
    %v267 = vpop.f32.mrb[0].mxu0
    %v268 = vadd.f32 0.0, %v267
    %v269 = vpop.f32.mrb[0].mxu0
    %v270 = vpop.f32.mrb[0].mxu0
    %v271 = vpop.f32.mrb[0].mxu0
    %272 = vdwg.mxu0
    %v274 = vrot.slane %v268, 2
    %v276 = vadd.f32 %v164, %v274
    %v277 = vxor.u32 %v220, 2147483648
    %v278 = vmul.f32 %v277, 1.442695
    %v279 = vpow.pop %v278
    %v280 = vadd.f32 %v279, 1.0
    %v281 = vrcp.pop %v280
    %v282 = vmul.f32 1.0, %v281
    %v283 = vtanh.pop %v220
    %v284 = vmul.f32 %v282, 0.0
    %286 = vrot.lane.b32.xlu0 %v283, 64
    %v287 = vpop.permute.xlu0 %286
    %v289 = vmul.f32 %v282, %v287
    %291 = vrot.lane.b32.xlu0 %v289, 32
    %v292 = vpop.permute.xlu0 %291
    %v294 = vadd.f32 %v284, %v292
    %v295 = vtanh.pop %v294
    %297 = vrot.lane.b32.xlu0 %v295, 64
    %v298 = vpop.permute.xlu0 %297
    %v300 = vmul.f32 %v282, %v298
    %v301 = vxor.u32 %v276, 2147483648
    %v302 = vmul.f32 %v301, 1.442695
    %v303 = vpow.pop %v302
    %v304 = vadd.f32 %v303, 1.0
    %v305 = vrcp.pop %v304
    %v306 = vmul.f32 1.0, %v305
    %v307 = vtanh.pop %v276
    %v308 = vmul.f32 %v306, 0.0
    %310 = vrot.lane.b32.xlu0 %v307, 64
    %v311 = vpop.permute.xlu0 %310
    %v313 = vmul.f32 %v306, %v311
    %315 = vrot.lane.b32.xlu0 %v313, 32
    %v316 = vpop.permute.xlu0 %315
    %v318 = vadd.f32 %v308, %v316
    %v319 = vtanh.pop %v318
    %321 = vrot.lane.b32.xlu0 %v319, 64
    %v322 = vpop.permute.xlu0 %321
    %v324 = vmul.f32 %v306, %v322
    %326 = vrot.lane.b32.xlu0 %v300, 32
    %v327 = vpop.permute.xlu0 %326
    %vm329 = vcmask 254976
    %330 = vst.msk [vmem:[#allocation9] sm:$0x3] %vm329, %v327
    %332 = vrot.lane.b32.xlu0 %v324, 64
    %v333 = vpop.permute.xlu0 %332
    %vm335 = vcmask 523526
    %336 = vst.msk [vmem:[#allocation9 + $0x8] sm:$0xc0] %vm335, %v333
    %v337 = vld [vmem:[#allocation2] sm:$0xc]
    %v338 = vld [vmem:[#allocation2 + $0x18] sm:$0x30]
    %v339 = vpack.c.bf16 %v300, %v300
    %341 = vrot.lane.b32.xlu0 %v339, 32
    %v342 = vpop.permute.xlu0 %341
    %v344 = vsel %vm112, %v342, 0
    %346 = vmatprep.subr.bf16.mxu0 0
    %347 = vmatpush1.bf16.msra.mxu0 %v173
    %348 = vmatprep.subr.bf16.mxu0 0
    %349 = vmatpush1.bf16.msra.mxu0 %v174
    %350 = vmatprep.subr.bf16.mxu0 0
    %351 = vmatpush1.bf16.msra.mxu0 0
    %352 = vmatprep.subr.bf16.mxu0 0
    %353 = vmatpush1.bf16.msra.mxu0 0
    %354 = vmatprep.subr.bf16.mxu0 0
    %355 = vmatpush1.bf16.msra.mxu0 0
    %356 = vmatprep.subr.bf16.mxu0 0
    %357 = vmatpush1.bf16.msra.mxu0 0
    %358 = vmatprep.subr.bf16.mxu0 0
    %359 = vmatpush1.bf16.msra.mxu0 0
    %360 = vmatprep.subr.bf16.mxu0 0
    %361 = vmatpush1.bf16.msra.mxu0 0
    %362 = vmatprep.subr.bf16.mxu0 0
    %363 = vmatpush1.bf16.msra.mxu0 0
    %364 = vmatprep.subr.bf16.mxu0 0
    %365 = vmatpush1.bf16.msra.mxu0 0
    %366 = vmatprep.subr.bf16.mxu0 0
    %367 = vmatpush1.bf16.msra.mxu0 0
    %368 = vmatprep.subr.bf16.mxu0 0
    %369 = vmatpush1.bf16.msra.mxu0 0
    %370 = vmatprep.subr.bf16.mxu0 0
    %371 = vmatpush1.bf16.msra.mxu0 0
    %372 = vmatprep.subr.bf16.mxu0 0
    %373 = vmatpush1.bf16.msra.mxu0 0
    %374 = vmatprep.subr.bf16.mxu0 0
    %375 = vmatpush1.bf16.msra.mxu0 0
    %376 = vmatprep.subr.bf16.mxu0 0
    %377 = vmatpush1.bf16.msra.mxu0 0
    %378 = vmatprep.mubr.bf16.mxu0 0
    %379 = vmatmul.mubr.bf16.gmra.mrb[0].mxu0 %v344
    %v380 = vpop.f32.mrb[0].mxu0
    %v381 = vadd.f32 0.0, %v380
    %v382 = vpop.f32.mrb[0].mxu0
    %v383 = vpop.f32.mrb[0].mxu0
    %v384 = vpop.f32.mrb[0].mxu0
    %385 = vdwg.mxu0
    %v387 = vrot.slane %v381, 6
    %v389 = vadd.f32 %v337, %v387
    %v390 = vpack.c.bf16 %v324, %v324
    %v392 = vrot.slane %v390, 3
    %393 = vrot.lane.b32.xlu0 %v392, 32
    %v394 = vpop.permute.xlu0 %393
    %v396 = vsel %vm112, %v394, 0
    %398 = vmatprep.subr.bf16.mxu0 0
    %399 = vmatpush1.bf16.msra.mxu0 %v229
    %400 = vmatprep.subr.bf16.mxu0 0
    %401 = vmatpush1.bf16.msra.mxu0 %v230
    %402 = vmatprep.subr.bf16.mxu0 0
    %403 = vmatpush1.bf16.msra.mxu0 0
    %404 = vmatprep.subr.bf16.mxu0 0
    %405 = vmatpush1.bf16.msra.mxu0 0
    %406 = vmatprep.subr.bf16.mxu0 0
    %407 = vmatpush1.bf16.msra.mxu0 0
    %408 = vmatprep.subr.bf16.mxu0 0
    %409 = vmatpush1.bf16.msra.mxu0 0
    %410 = vmatprep.subr.bf16.mxu0 0
    %411 = vmatpush1.bf16.msra.mxu0 0
    %412 = vmatprep.subr.bf16.mxu0 0
    %413 = vmatpush1.bf16.msra.mxu0 0
    %414 = vmatprep.subr.bf16.mxu0 0
    %415 = vmatpush1.bf16.msra.mxu0 0
    %416 = vmatprep.subr.bf16.mxu0 0
    %417 = vmatpush1.bf16.msra.mxu0 0
    %418 = vmatprep.subr.bf16.mxu0 0
    %419 = vmatpush1.bf16.msra.mxu0 0
    %420 = vmatprep.subr.bf16.mxu0 0
    %421 = vmatpush1.bf16.msra.mxu0 0
    %422 = vmatprep.subr.bf16.mxu0 0
    %423 = vmatpush1.bf16.msra.mxu0 0
    %424 = vmatprep.subr.bf16.mxu0 0
    %425 = vmatpush1.bf16.msra.mxu0 0
    %426 = vmatprep.subr.bf16.mxu0 0
    %427 = vmatpush1.bf16.msra.mxu0 0
    %428 = vmatprep.subr.bf16.mxu0 0
    %429 = vmatpush1.bf16.msra.mxu0 0
    %430 = vmatprep.mubr.bf16.mxu0 0
    %431 = vmatmul.mubr.bf16.gmra.mrb[0].mxu0 %v396
    %v432 = vpop.f32.mrb[0].mxu0
    %v433 = vadd.f32 0.0, %v432
    %v434 = vpop.f32.mrb[0].mxu0
    %v435 = vpop.f32.mrb[0].mxu0
    %v436 = vpop.f32.mrb[0].mxu0
    %437 = vdwg.mxu0
    %v439 = vrot.slane %v433, 4
    %v441 = vadd.f32 %v338, %v439
    %v442 = vxor.u32 %v389, 2147483648
    %v443 = vmul.f32 %v442, 1.442695
    %v444 = vpow.pop %v443
    %v445 = vadd.f32 %v444, 1.0
    %v446 = vrcp.pop %v445
    %v447 = vmul.f32 1.0, %v446
    %v448 = vtanh.pop %v389
    %v450 = vrot.slane %v294, 6
    %v452 = vmul.f32 %v447, %v450
    %454 = vrot.lane.b32.xlu0 %v448, 64
    %v455 = vpop.permute.xlu0 %454
    %v457 = vmul.f32 %v447, %v455
    %459 = vrot.lane.b32.xlu0 %v457, 32
    %v460 = vpop.permute.xlu0 %459
    %v462 = vadd.f32 %v452, %v460
    %v463 = vtanh.pop %v462
    %465 = vrot.lane.b32.xlu0 %v463, 64
    %v466 = vpop.permute.xlu0 %465
    %v468 = vmul.f32 %v447, %v466
    %v469 = vxor.u32 %v441, 2147483648
    %v470 = vmul.f32 %v469, 1.442695
    %v471 = vpow.pop %v470
    %v472 = vadd.f32 %v471, 1.0
    %v473 = vrcp.pop %v472
    %v474 = vmul.f32 1.0, %v473
    %v475 = vtanh.pop %v441
    %v477 = vrot.slane %v318, 2
    %v479 = vmul.f32 %v474, %v477
    %481 = vrot.lane.b32.xlu0 %v475, 64
    %v482 = vpop.permute.xlu0 %481
    %v484 = vmul.f32 %v474, %v482
    %486 = vrot.lane.b32.xlu0 %v484, 32
    %v487 = vpop.permute.xlu0 %486
    %v489 = vadd.f32 %v479, %v487
    %v490 = vtanh.pop %v489
    %492 = vrot.lane.b32.xlu0 %v490, 64
    %v493 = vpop.permute.xlu0 %492
    %v495 = vmul.f32 %v474, %v493
    %497 = vrot.lane.b32.xlu0 %v468, 32
    %v498 = vpop.permute.xlu0 %497
    %vm500 = vcmask 257026
    %501 = vst.msk [vmem:[#allocation9] sm:$0xc] %vm500, %v498
    %503 = vrot.lane.b32.xlu0 %v495, 64
    %v504 = vpop.permute.xlu0 %503
    %vm506 = vcmask 521476
    %507 = vst.msk [vmem:[#allocation9 + $0x8] sm:$0x30] %vm506, %v504
    %v508 = vld [vmem:[#allocation2] sm:$0x30]
    %v509 = vld [vmem:[#allocation2 + $0x18] sm:$0xc]
    %v510 = vpack.c.bf16 %v468, %v468
    %v512 = vrot.slane %v510, 1
    %513 = vrot.lane.b32.xlu0 %v512, 32
    %v514 = vpop.permute.xlu0 %513
    %v516 = vsel %vm112, %v514, 0
    %518 = vmatprep.subr.bf16.mxu0 0
    %519 = vmatpush1.bf16.msra.mxu0 %v173
    %520 = vmatprep.subr.bf16.mxu0 0
    %521 = vmatpush1.bf16.msra.mxu0 %v174
    %522 = vmatprep.subr.bf16.mxu0 0
    %523 = vmatpush1.bf16.msra.mxu0 0
    %524 = vmatprep.subr.bf16.mxu0 0
    %525 = vmatpush1.bf16.msra.mxu0 0
    %526 = vmatprep.subr.bf16.mxu0 0
    %527 = vmatpush1.bf16.msra.mxu0 0
    %528 = vmatprep.subr.bf16.mxu0 0
    %529 = vmatpush1.bf16.msra.mxu0 0
    %530 = vmatprep.subr.bf16.mxu0 0
    %531 = vmatpush1.bf16.msra.mxu0 0
    %532 = vmatprep.subr.bf16.mxu0 0
    %533 = vmatpush1.bf16.msra.mxu0 0
    %534 = vmatprep.subr.bf16.mxu0 0
    %535 = vmatpush1.bf16.msra.mxu0 0
    %536 = vmatprep.subr.bf16.mxu0 0
    %537 = vmatpush1.bf16.msra.mxu0 0
    %538 = vmatprep.subr.bf16.mxu0 0
    %539 = vmatpush1.bf16.msra.mxu0 0
    %540 = vmatprep.subr.bf16.mxu0 0
    %541 = vmatpush1.bf16.msra.mxu0 0
    %542 = vmatprep.subr.bf16.mxu0 0
    %543 = vmatpush1.bf16.msra.mxu0 0
    %544 = vmatprep.subr.bf16.mxu0 0
    %545 = vmatpush1.bf16.msra.mxu0 0
    %546 = vmatprep.subr.bf16.mxu0 0
    %547 = vmatpush1.bf16.msra.mxu0 0
    %548 = vmatprep.subr.bf16.mxu0 0
    %549 = vmatpush1.bf16.msra.mxu0 0
    %550 = vmatprep.mubr.bf16.mxu0 0
    %551 = vmatmul.mubr.bf16.gmra.mrb[0].mxu0 %v516
    %v552 = vpop.f32.mrb[0].mxu0
    %v553 = vadd.f32 0.0, %v552
    %v554 = vpop.f32.mrb[0].mxu0
    %v555 = vpop.f32.mrb[0].mxu0
    %v556 = vpop.f32.mrb[0].mxu0
    %557 = vdwg.mxu0
    %v559 = vrot.slane %v553, 4
    %v561 = vadd.f32 %v508, %v559
    %v562 = vpack.c.bf16 %v495, %v495
    %v564 = vrot.slane %v562, 2
    %565 = vrot.lane.b32.xlu0 %v564, 32
    %v566 = vpop.permute.xlu0 %565
    %v568 = vsel %vm112, %v566, 0
    %570 = vmatprep.subr.bf16.mxu0 0
    %571 = vmatpush1.bf16.msra.mxu0 %v229
    %572 = vmatprep.subr.bf16.mxu0 0
    %573 = vmatpush1.bf16.msra.mxu0 %v230
    %574 = vmatprep.subr.bf16.mxu0 0
    %575 = vmatpush1.bf16.msra.mxu0 0
    %576 = vmatprep.subr.bf16.mxu0 0
    %577 = vmatpush1.bf16.msra.mxu0 0
    %578 = vmatprep.subr.bf16.mxu0 0
    %579 = vmatpush1.bf16.msra.mxu0 0
    %580 = vmatprep.subr.bf16.mxu0 0
    %581 = vmatpush1.bf16.msra.mxu0 0
    %582 = vmatprep.subr.bf16.mxu0 0
    %583 = vmatpush1.bf16.msra.mxu0 0
    %584 = vmatprep.subr.bf16.mxu0 0
    %585 = vmatpush1.bf16.msra.mxu0 0
    %586 = vmatprep.subr.bf16.mxu0 0
    %587 = vmatpush1.bf16.msra.mxu0 0
    %588 = vmatprep.subr.bf16.mxu0 0
    %589 = vmatpush1.bf16.msra.mxu0 0
    %590 = vmatprep.subr.bf16.mxu0 0
    %591 = vmatpush1.bf16.msra.mxu0 0
    %592 = vmatprep.subr.bf16.mxu0 0
    %593 = vmatpush1.bf16.msra.mxu0 0
    %594 = vmatprep.subr.bf16.mxu0 0
    %595 = vmatpush1.bf16.msra.mxu0 0
    %596 = vmatprep.subr.bf16.mxu0 0
    %597 = vmatpush1.bf16.msra.mxu0 0
    %598 = vmatprep.subr.bf16.mxu0 0
    %599 = vmatpush1.bf16.msra.mxu0 0
    %600 = vmatprep.subr.bf16.mxu0 0
    %601 = vmatpush1.bf16.msra.mxu0 0
    %602 = vmatprep.mubr.bf16.mxu0 0
    %603 = vmatmul.mubr.bf16.gmra.mrb[0].mxu0 %v568
    %v604 = vpop.f32.mrb[0].mxu0
    %v605 = vadd.f32 0.0, %v604
    %v606 = vpop.f32.mrb[0].mxu0
    %v607 = vpop.f32.mrb[0].mxu0
    %v608 = vpop.f32.mrb[0].mxu0
    %609 = vdwg.mxu0
    %v611 = vrot.slane %v605, 6
    %v613 = vadd.f32 %v509, %v611
    %v614 = vxor.u32 %v561, 2147483648
    %v615 = vmul.f32 %v614, 1.442695
    %v616 = vpow.pop %v615
    %v617 = vadd.f32 %v616, 1.0
    %v618 = vrcp.pop %v617
    %v619 = vmul.f32 1.0, %v618
    %v620 = vtanh.pop %v561
    %v622 = vrot.slane %v462, 6
    %v624 = vmul.f32 %v619, %v622
    %626 = vrot.lane.b32.xlu0 %v620, 64
    %v627 = vpop.permute.xlu0 %626
    %v629 = vmul.f32 %v619, %v627
    %631 = vrot.lane.b32.xlu0 %v629, 32
    %v632 = vpop.permute.xlu0 %631
    %v634 = vadd.f32 %v624, %v632
    %v635 = vtanh.pop %v634
    %637 = vrot.lane.b32.xlu0 %v635, 64
    %v638 = vpop.permute.xlu0 %637
    %v640 = vmul.f32 %v619, %v638
    %v641 = vxor.u32 %v613, 2147483648
    %v642 = vmul.f32 %v641, 1.442695
    %v643 = vpow.pop %v642
    %v644 = vadd.f32 %v643, 1.0
    %v645 = vrcp.pop %v644
    %v646 = vmul.f32 1.0, %v645
    %v647 = vtanh.pop %v613
    %v649 = vrot.slane %v489, 2
    %v651 = vmul.f32 %v646, %v649
    %653 = vrot.lane.b32.xlu0 %v647, 64
    %v654 = vpop.permute.xlu0 %653
    %v656 = vmul.f32 %v646, %v654
    %658 = vrot.lane.b32.xlu0 %v656, 32
    %v659 = vpop.permute.xlu0 %658
    %v661 = vadd.f32 %v651, %v659
    %v662 = vtanh.pop %v661
    %664 = vrot.lane.b32.xlu0 %v662, 64
    %v665 = vpop.permute.xlu0 %664
    %v667 = vmul.f32 %v646, %v665
    %669 = vrot.lane.b32.xlu0 %v640, 32
    %v670 = vpop.permute.xlu0 %669
    %vm672 = vcmask 259076
    %673 = vst.msk [vmem:[#allocation9] sm:$0x30] %vm672, %v670
    %675 = vrot.lane.b32.xlu0 %v667, 64
    %v676 = vpop.permute.xlu0 %675
    %vm678 = vcmask 519426
    %679 = vst.msk [vmem:[#allocation9 + $0x8] sm:$0xc] %vm678, %v676
    %v680 = vld [vmem:[#allocation2] sm:$0xc0]
    %v681 = vld [vmem:[#allocation2 + $0x18] sm:$0x3]
    %v682 = vpack.c.bf16 %v640, %v640
    %v684 = vrot.slane %v682, 2
    %685 = vrot.lane.b32.xlu0 %v684, 32
    %v686 = vpop.permute.xlu0 %685
    %v688 = vsel %vm112, %v686, 0
    %690 = vmatprep.subr.bf16.mxu0 0
    %691 = vmatpush1.bf16.msra.mxu0 %v173
    %692 = vmatprep.subr.bf16.mxu0 0
    %693 = vmatpush1.bf16.msra.mxu0 %v174
    %694 = vmatprep.subr.bf16.mxu0 0
    %695 = vmatpush1.bf16.msra.mxu0 0
    %696 = vmatprep.subr.bf16.mxu0 0
    %697 = vmatpush1.bf16.msra.mxu0 0
    %698 = vmatprep.subr.bf16.mxu0 0
    %699 = vmatpush1.bf16.msra.mxu0 0
    %700 = vmatprep.subr.bf16.mxu0 0
    %701 = vmatpush1.bf16.msra.mxu0 0
    %702 = vmatprep.subr.bf16.mxu0 0
    %703 = vmatpush1.bf16.msra.mxu0 0
    %704 = vmatprep.subr.bf16.mxu0 0
    %705 = vmatpush1.bf16.msra.mxu0 0
    %706 = vmatprep.subr.bf16.mxu0 0
    %707 = vmatpush1.bf16.msra.mxu0 0
    %708 = vmatprep.subr.bf16.mxu0 0
    %709 = vmatpush1.bf16.msra.mxu0 0
    %710 = vmatprep.subr.bf16.mxu0 0
    %711 = vmatpush1.bf16.msra.mxu0 0
    %712 = vmatprep.subr.bf16.mxu0 0
    %713 = vmatpush1.bf16.msra.mxu0 0
    %714 = vmatprep.subr.bf16.mxu0 0
    %715 = vmatpush1.bf16.msra.mxu0 0
    %716 = vmatprep.subr.bf16.mxu0 0
    %717 = vmatpush1.bf16.msra.mxu0 0
    %718 = vmatprep.subr.bf16.mxu0 0
    %719 = vmatpush1.bf16.msra.mxu0 0
    %720 = vmatprep.subr.bf16.mxu0 0
    %721 = vmatpush1.bf16.msra.mxu0 0
    %722 = vmatprep.mubr.bf16.mxu0 0
    %723 = vmatmul.mubr.bf16.gmra.mrb[0].mxu0 %v688
    %v724 = vpop.f32.mrb[0].mxu0
    %v725 = vadd.f32 0.0, %v724
    %v726 = vpop.f32.mrb[0].mxu0
    %v727 = vpop.f32.mrb[0].mxu0
    %v728 = vpop.f32.mrb[0].mxu0
    %729 = vdwg.mxu0
    %v731 = vrot.slane %v725, 2
    %v733 = vadd.f32 %v680, %v731
    %v734 = vpack.c.bf16 %v667, %v667
    %v736 = vrot.slane %v734, 1
    %737 = vrot.lane.b32.xlu0 %v736, 32
    %v738 = vpop.permute.xlu0 %737
    %v740 = vsel %vm112, %v738, 0
    %742 = vmatprep.subr.bf16.mxu0 0
    %743 = vmatpush1.bf16.msra.mxu0 %v229
    %744 = vmatprep.subr.bf16.mxu0 0
    %745 = vmatpush1.bf16.msra.mxu0 %v230
    %746 = vmatprep.subr.bf16.mxu0 0
    %747 = vmatpush1.bf16.msra.mxu0 0
    %748 = vmatprep.subr.bf16.mxu0 0
    %749 = vmatpush1.bf16.msra.mxu0 0
    %750 = vmatprep.subr.bf16.mxu0 0
    %751 = vmatpush1.bf16.msra.mxu0 0
    %752 = vmatprep.subr.bf16.mxu0 0
    %753 = vmatpush1.bf16.msra.mxu0 0
    %754 = vmatprep.subr.bf16.mxu0 0
    %755 = vmatpush1.bf16.msra.mxu0 0
    %756 = vmatprep.subr.bf16.mxu0 0
    %757 = vmatpush1.bf16.msra.mxu0 0
    %758 = vmatprep.subr.bf16.mxu0 0
    %759 = vmatpush1.bf16.msra.mxu0 0
    %760 = vmatprep.subr.bf16.mxu0 0
    %761 = vmatpush1.bf16.msra.mxu0 0
    %762 = vmatprep.subr.bf16.mxu0 0
    %763 = vmatpush1.bf16.msra.mxu0 0
    %764 = vmatprep.subr.bf16.mxu0 0
    %765 = vmatpush1.bf16.msra.mxu0 0
    %766 = vmatprep.subr.bf16.mxu0 0
    %767 = vmatpush1.bf16.msra.mxu0 0
    %768 = vmatprep.subr.bf16.mxu0 0
    %769 = vmatpush1.bf16.msra.mxu0 0
    %770 = vmatprep.subr.bf16.mxu0 0
    %771 = vmatpush1.bf16.msra.mxu0 0
    %772 = vmatprep.subr.bf16.mxu0 0
    %773 = vmatpush1.bf16.msra.mxu0 0
    %774 = vmatprep.mubr.bf16.mxu0 0
    %775 = vmatmul.mubr.bf16.gmra.mrb[0].mxu0 %v740
    %v776 = vpop.f32.mrb[0].mxu0
    %v777 = vadd.f32 0.0, %v776
    %v778 = vpop.f32.mrb[0].mxu0
    %v779 = vpop.f32.mrb[0].mxu0
    %v780 = vpop.f32.mrb[0].mxu0
    %781 = vdwg.mxu0
    %v782 = vadd.f32 %v681, %v777
    %v783 = vxor.u32 %v733, 2147483648
    %v784 = vmul.f32 %v783, 1.442695
    %v785 = vpow.pop %v784
    %v786 = vadd.f32 %v785, 1.0
    %v787 = vrcp.pop %v786
    %v788 = vmul.f32 1.0, %v787
    %v789 = vtanh.pop %v733
    %v791 = vrot.slane %v634, 6
    %v793 = vmul.f32 %v788, %v791
    %795 = vrot.lane.b32.xlu0 %v789, 64
    %v796 = vpop.permute.xlu0 %795
    %v798 = vmul.f32 %v788, %v796
    %800 = vrot.lane.b32.xlu0 %v798, 32
    %v801 = vpop.permute.xlu0 %800
    %v803 = vadd.f32 %v793, %v801
    %v804 = vtanh.pop %v803
    %806 = vrot.lane.b32.xlu0 %v804, 64
    %v807 = vpop.permute.xlu0 %806
    %v809 = vmul.f32 %v788, %v807
    %v810 = vxor.u32 %v782, 2147483648
    %v811 = vmul.f32 %v810, 1.442695
    %v812 = vpow.pop %v811
    %v813 = vadd.f32 %v812, 1.0
    %v814 = vrcp.pop %v813
    %v815 = vmul.f32 1.0, %v814
    %v816 = vtanh.pop %v782
    %v818 = vrot.slane %v661, 2
    %v820 = vmul.f32 %v815, %v818
    %822 = vrot.lane.b32.xlu0 %v816, 64
    %v823 = vpop.permute.xlu0 %822
    %v825 = vmul.f32 %v815, %v823
    %827 = vrot.lane.b32.xlu0 %v825, 32
    %v828 = vpop.permute.xlu0 %827
    %v830 = vadd.f32 %v820, %v828
    %v831 = vtanh.pop %v830
    %833 = vrot.lane.b32.xlu0 %v831, 64
    %v834 = vpop.permute.xlu0 %833
    %v836 = vmul.f32 %v815, %v834
    %838 = vrot.lane.b32.xlu0 %v809, 32
    %v839 = vpop.permute.xlu0 %838
    %vm841 = vcmask 261126
    %842 = vst.msk [vmem:[#allocation9] sm:$0xc0] %vm841, %v839
    %844 = vrot.lane.b32.xlu0 %v836, 64
    %v845 = vpop.permute.xlu0 %844
    %vm847 = vcmask 517376
    %848 = vst.msk [vmem:[#allocation9 + $0x8] sm:$0x3] %vm847, %v845
    %v849 = vld [vmem:[#allocation2 + $0x10] sm:$0x3]
    %v850 = vld [vmem:[#allocation2 + $0x8] sm:$0xc0]
    %v851 = vpack.c.bf16 %v809, %v809
    %v853 = vrot.slane %v851, 3
    %854 = vrot.lane.b32.xlu0 %v853, 32
    %v855 = vpop.permute.xlu0 %854
    %v857 = vsel %vm112, %v855, 0
    %859 = vmatprep.subr.bf16.mxu0 0
    %860 = vmatpush1.bf16.msra.mxu0 %v173
    %861 = vmatprep.subr.bf16.mxu0 0
    %862 = vmatpush1.bf16.msra.mxu0 %v174
    %863 = vmatprep.subr.bf16.mxu0 0
    %864 = vmatpush1.bf16.msra.mxu0 0
    %865 = vmatprep.subr.bf16.mxu0 0
    %866 = vmatpush1.bf16.msra.mxu0 0
    %867 = vmatprep.subr.bf16.mxu0 0
    %868 = vmatpush1.bf16.msra.mxu0 0
    %869 = vmatprep.subr.bf16.mxu0 0
    %870 = vmatpush1.bf16.msra.mxu0 0
    %871 = vmatprep.subr.bf16.mxu0 0
    %872 = vmatpush1.bf16.msra.mxu0 0
    %873 = vmatprep.subr.bf16.mxu0 0
    %874 = vmatpush1.bf16.msra.mxu0 0
    %875 = vmatprep.subr.bf16.mxu0 0
    %876 = vmatpush1.bf16.msra.mxu0 0
    %877 = vmatprep.subr.bf16.mxu0 0
    %878 = vmatpush1.bf16.msra.mxu0 0
    %879 = vmatprep.subr.bf16.mxu0 0
    %880 = vmatpush1.bf16.msra.mxu0 0
    %881 = vmatprep.subr.bf16.mxu0 0
    %882 = vmatpush1.bf16.msra.mxu0 0
    %883 = vmatprep.subr.bf16.mxu0 0
    %884 = vmatpush1.bf16.msra.mxu0 0
    %885 = vmatprep.subr.bf16.mxu0 0
    %886 = vmatpush1.bf16.msra.mxu0 0
    %887 = vmatprep.subr.bf16.mxu0 0
    %888 = vmatpush1.bf16.msra.mxu0 0
    %889 = vmatprep.subr.bf16.mxu0 0
    %890 = vmatpush1.bf16.msra.mxu0 0
    %891 = vmatprep.mubr.bf16.mxu0 0
    %892 = vmatmul.mubr.bf16.gmra.mrb[0].mxu0 %v857
    %v893 = vpop.f32.mrb[0].mxu0
    %v894 = vadd.f32 0.0, %v893
    %v895 = vpop.f32.mrb[0].mxu0
    %v896 = vpop.f32.mrb[0].mxu0
    %v897 = vpop.f32.mrb[0].mxu0
    %898 = vdwg.mxu0
    %v899 = vadd.f32 %v849, %v894
    %v900 = vpack.c.bf16 %v836, %v836
    %902 = vrot.lane.b32.xlu0 %v900, 32
    %v903 = vpop.permute.xlu0 %902
    %v905 = vsel %vm112, %v903, 0
    %907 = vmatprep.subr.bf16.mxu0 0
    %908 = vmatpush1.bf16.msra.mxu0 %v229
    %909 = vmatprep.subr.bf16.mxu0 0
    %910 = vmatpush1.bf16.msra.mxu0 %v230
    %911 = vmatprep.subr.bf16.mxu0 0
    %912 = vmatpush1.bf16.msra.mxu0 0
    %913 = vmatprep.subr.bf16.mxu0 0
    %914 = vmatpush1.bf16.msra.mxu0 0
    %915 = vmatprep.subr.bf16.mxu0 0
    %916 = vmatpush1.bf16.msra.mxu0 0
    %917 = vmatprep.subr.bf16.mxu0 0
    %918 = vmatpush1.bf16.msra.mxu0 0
    %919 = vmatprep.subr.bf16.mxu0 0
    %920 = vmatpush1.bf16.msra.mxu0 0
    %921 = vmatprep.subr.bf16.mxu0 0
    %922 = vmatpush1.bf16.msra.mxu0 0
    %923 = vmatprep.subr.bf16.mxu0 0
    %924 = vmatpush1.bf16.msra.mxu0 0
    %925 = vmatprep.subr.bf16.mxu0 0
    %926 = vmatpush1.bf16.msra.mxu0 0
    %927 = vmatprep.subr.bf16.mxu0 0
    %928 = vmatpush1.bf16.msra.mxu0 0
    %929 = vmatprep.subr.bf16.mxu0 0
    %930 = vmatpush1.bf16.msra.mxu0 0
    %931 = vmatprep.subr.bf16.mxu0 0
    %932 = vmatpush1.bf16.msra.mxu0 0
    %933 = vmatprep.subr.bf16.mxu0 0
    %934 = vmatpush1.bf16.msra.mxu0 0
    %935 = vmatprep.subr.bf16.mxu0 0
    %936 = vmatpush1.bf16.msra.mxu0 0
    %937 = vmatprep.subr.bf16.mxu0 0
    %938 = vmatpush1.bf16.msra.mxu0 0
    %939 = vmatprep.mubr.bf16.mxu0 0
    %940 = vmatmul.mubr.bf16.gmra.mrb[0].mxu0 %v905
    %v941 = vpop.f32.mrb[0].mxu0
    %v942 = vadd.f32 0.0, %v941
    %v943 = vpop.f32.mrb[0].mxu0
    %v944 = vpop.f32.mrb[0].mxu0
    %v945 = vpop.f32.mrb[0].mxu0
    %946 = vdwg.mxu0
    %v948 = vrot.slane %v942, 2
    %v950 = vadd.f32 %v850, %v948
    %v951 = vxor.u32 %v899, 2147483648
    %v952 = vmul.f32 %v951, 1.442695
    %v953 = vpow.pop %v952
    %v954 = vadd.f32 %v953, 1.0
    %v955 = vrcp.pop %v954
    %v956 = vmul.f32 1.0, %v955
    %v957 = vtanh.pop %v899
    %v959 = vrot.slane %v803, 6
    %v961 = vmul.f32 %v956, %v959
    %963 = vrot.lane.b32.xlu0 %v957, 64
    %v964 = vpop.permute.xlu0 %963
    %v966 = vmul.f32 %v956, %v964
    %968 = vrot.lane.b32.xlu0 %v966, 32
    %v969 = vpop.permute.xlu0 %968
    %v971 = vadd.f32 %v961, %v969
    %v972 = vtanh.pop %v971
    %974 = vrot.lane.b32.xlu0 %v972, 64
    %v975 = vpop.permute.xlu0 %974
    %v977 = vmul.f32 %v956, %v975
    %v978 = vxor.u32 %v950, 2147483648
    %v979 = vmul.f32 %v978, 1.442695
    %v980 = vpow.pop %v979
    %v981 = vadd.f32 %v980, 1.0
    %v982 = vrcp.pop %v981
    %v983 = vmul.f32 1.0, %v982
    %v984 = vtanh.pop %v950
    %v986 = vrot.slane %v830, 2
    %v988 = vmul.f32 %v983, %v986
    %990 = vrot.lane.b32.xlu0 %v984, 64
    %v991 = vpop.permute.xlu0 %990
    %v993 = vmul.f32 %v983, %v991
    %995 = vrot.lane.b32.xlu0 %v993, 32
    %v996 = vpop.permute.xlu0 %995
    %v998 = vadd.f32 %v988, %v996
    %v999 = vtanh.pop %v998
    %1001 = vrot.lane.b32.xlu0 %v999, 64
    %v1002 = vpop.permute.xlu0 %1001
    %v1004 = vmul.f32 %v983, %v1002
    %1006 = vrot.lane.b32.xlu0 %v977, 32
    %v1007 = vpop.permute.xlu0 %1006
    %1009 = vst.msk [vmem:[#allocation9 + $0x8] sm:$0x3] %vm329, %v1007
    %1011 = vrot.lane.b32.xlu0 %v1004, 64
    %v1012 = vpop.permute.xlu0 %1011
    %1014 = vst.msk [vmem:[#allocation9] sm:$0xc0] %vm335, %v1012
    %v1015 = vld [vmem:[#allocation2 + $0x10] sm:$0xc]
    %v1016 = vld [vmem:[#allocation2 + $0x8] sm:$0x30]
    %v1017 = vpack.c.bf16 %v977, %v977
    %1019 = vrot.lane.b32.xlu0 %v1017, 32
    %v1020 = vpop.permute.xlu0 %1019
    %v1022 = vsel %vm112, %v1020, 0
    %1024 = vmatprep.subr.bf16.mxu0 0
    %1025 = vmatpush1.bf16.msra.mxu0 %v173
    %1026 = vmatprep.subr.bf16.mxu0 0
    %1027 = vmatpush1.bf16.msra.mxu0 %v174
    %1028 = vmatprep.subr.bf16.mxu0 0
    %1029 = vmatpush1.bf16.msra.mxu0 0
    %1030 = vmatprep.subr.bf16.mxu0 0
    %1031 = vmatpush1.bf16.msra.mxu0 0
    %1032 = vmatprep.subr.bf16.mxu0 0
    %1033 = vmatpush1.bf16.msra.mxu0 0
    %1034 = vmatprep.subr.bf16.mxu0 0
    %1035 = vmatpush1.bf16.msra.mxu0 0
    %1036 = vmatprep.subr.bf16.mxu0 0
    %1037 = vmatpush1.bf16.msra.mxu0 0
    %1038 = vmatprep.subr.bf16.mxu0 0
    %1039 = vmatpush1.bf16.msra.mxu0 0
    %1040 = vmatprep.subr.bf16.mxu0 0
    %1041 = vmatpush1.bf16.msra.mxu0 0
    %1042 = vmatprep.subr.bf16.mxu0 0
    %1043 = vmatpush1.bf16.msra.mxu0 0
    %1044 = vmatprep.subr.bf16.mxu0 0
    %1045 = vmatpush1.bf16.msra.mxu0 0
    %1046 = vmatprep.subr.bf16.mxu0 0
    %1047 = vmatpush1.bf16.msra.mxu0 0
    %1048 = vmatprep.subr.bf16.mxu0 0
    %1049 = vmatpush1.bf16.msra.mxu0 0
    %1050 = vmatprep.subr.bf16.mxu0 0
    %1051 = vmatpush1.bf16.msra.mxu0 0
    %1052 = vmatprep.subr.bf16.mxu0 0
    %1053 = vmatpush1.bf16.msra.mxu0 0
    %1054 = vmatprep.subr.bf16.mxu0 0
    %1055 = vmatpush1.bf16.msra.mxu0 0
    %1056 = vmatprep.mubr.bf16.mxu0 0
    %1057 = vmatmul.mubr.bf16.gmra.mrb[0].mxu0 %v1022
    %v1058 = vpop.f32.mrb[0].mxu0
    %v1059 = vadd.f32 0.0, %v1058
    %v1060 = vpop.f32.mrb[0].mxu0
    %v1061 = vpop.f32.mrb[0].mxu0
    %v1062 = vpop.f32.mrb[0].mxu0
    %1063 = vdwg.mxu0
    %v1065 = vrot.slane %v1059, 6
    %v1067 = vadd.f32 %v1015, %v1065
    %v1068 = vpack.c.bf16 %v1004, %v1004
    %v1070 = vrot.slane %v1068, 3
    %1071 = vrot.lane.b32.xlu0 %v1070, 32
    %v1072 = vpop.permute.xlu0 %1071
    %v1074 = vsel %vm112, %v1072, 0
    %1076 = vmatprep.subr.bf16.mxu0 0
    %1077 = vmatpush1.bf16.msra.mxu0 %v229
    %1078 = vmatprep.subr.bf16.mxu0 0
    %1079 = vmatpush1.bf16.msra.mxu0 %v230
    %1080 = vmatprep.subr.bf16.mxu0 0
    %1081 = vmatpush1.bf16.msra.mxu0 0
    %1082 = vmatprep.subr.bf16.mxu0 0
    %1083 = vmatpush1.bf16.msra.mxu0 0
    %1084 = vmatprep.subr.bf16.mxu0 0
    %1085 = vmatpush1.bf16.msra.mxu0 0
    %1086 = vmatprep.subr.bf16.mxu0 0
    %1087 = vmatpush1.bf16.msra.mxu0 0
    %1088 = vmatprep.subr.bf16.mxu0 0
    %1089 = vmatpush1.bf16.msra.mxu0 0
    %1090 = vmatprep.subr.bf16.mxu0 0
    %1091 = vmatpush1.bf16.msra.mxu0 0
    %1092 = vmatprep.subr.bf16.mxu0 0
    %1093 = vmatpush1.bf16.msra.mxu0 0
    %1094 = vmatprep.subr.bf16.mxu0 0
    %1095 = vmatpush1.bf16.msra.mxu0 0
    %1096 = vmatprep.subr.bf16.mxu0 0
    %1097 = vmatpush1.bf16.msra.mxu0 0
    %1098 = vmatprep.subr.bf16.mxu0 0
    %1099 = vmatpush1.bf16.msra.mxu0 0
    %1100 = vmatprep.subr.bf16.mxu0 0
    %1101 = vmatpush1.bf16.msra.mxu0 0
    %1102 = vmatprep.subr.bf16.mxu0 0
    %1103 = vmatpush1.bf16.msra.mxu0 0
    %1104 = vmatprep.subr.bf16.mxu0 0
    %1105 = vmatpush1.bf16.msra.mxu0 0
    %1106 = vmatprep.subr.bf16.mxu0 0
    %1107 = vmatpush1.bf16.msra.mxu0 0
    %1108 = vmatprep.mubr.bf16.mxu0 0
    %1109 = vmatmul.mubr.bf16.gmra.mrb[0].mxu0 %v1074
    %v1110 = vpop.f32.mrb[0].mxu0
    %v1111 = vadd.f32 0.0, %v1110
    %v1112 = vpop.f32.mrb[0].mxu0
    %v1113 = vpop.f32.mrb[0].mxu0
    %v1114 = vpop.f32.mrb[0].mxu0
    %1115 = vdwg.mxu0
    %v1117 = vrot.slane %v1111, 4
    %v1119 = vadd.f32 %v1016, %v1117
    %v1120 = vxor.u32 %v1067, 2147483648
    %v1121 = vmul.f32 %v1120, 1.442695
    %v1122 = vpow.pop %v1121
    %v1123 = vadd.f32 %v1122, 1.0
    %v1124 = vrcp.pop %v1123
    %v1125 = vmul.f32 1.0, %v1124
    %v1126 = vtanh.pop %v1067
    %v1128 = vrot.slane %v971, 6
    %v1130 = vmul.f32 %v1125, %v1128
    %1132 = vrot.lane.b32.xlu0 %v1126, 64
    %v1133 = vpop.permute.xlu0 %1132
    %v1135 = vmul.f32 %v1125, %v1133
    %1137 = vrot.lane.b32.xlu0 %v1135, 32
    %v1138 = vpop.permute.xlu0 %1137
    %v1140 = vadd.f32 %v1130, %v1138
    %v1141 = vtanh.pop %v1140
    %1143 = vrot.lane.b32.xlu0 %v1141, 64
    %v1144 = vpop.permute.xlu0 %1143
    %v1146 = vmul.f32 %v1125, %v1144
    %v1147 = vxor.u32 %v1119, 2147483648
    %v1148 = vmul.f32 %v1147, 1.442695
    %v1149 = vpow.pop %v1148
    %v1150 = vadd.f32 %v1149, 1.0
    %v1151 = vrcp.pop %v1150
    %v1152 = vmul.f32 1.0, %v1151
    %v1153 = vtanh.pop %v1119
    %v1155 = vrot.slane %v998, 2
    %v1157 = vmul.f32 %v1152, %v1155
    %1159 = vrot.lane.b32.xlu0 %v1153, 64
    %v1160 = vpop.permute.xlu0 %1159
    %v1162 = vmul.f32 %v1152, %v1160
    %1164 = vrot.lane.b32.xlu0 %v1162, 32
    %v1165 = vpop.permute.xlu0 %1164
    %v1167 = vadd.f32 %v1157, %v1165
    %v1168 = vtanh.pop %v1167
    %1170 = vrot.lane.b32.xlu0 %v1168, 64
    %v1171 = vpop.permute.xlu0 %1170
    %v1173 = vmul.f32 %v1152, %v1171
    %1175 = vrot.lane.b32.xlu0 %v1146, 32
    %v1176 = vpop.permute.xlu0 %1175
    %1178 = vst.msk [vmem:[#allocation9 + $0x8] sm:$0xc] %vm500, %v1176
    %1180 = vrot.lane.b32.xlu0 %v1173, 64
    %v1181 = vpop.permute.xlu0 %1180
    %1183 = vst.msk [vmem:[#allocation9] sm:$0x30] %vm506, %v1181
    %v1184 = vld [vmem:[#allocation2 + $0x10] sm:$0x30]
    %v1185 = vld [vmem:[#allocation2 + $0x8] sm:$0xc]
    %v1186 = vpack.c.bf16 %v1146, %v1146
    %v1188 = vrot.slane %v1186, 1
    %1189 = vrot.lane.b32.xlu0 %v1188, 32
    %v1190 = vpop.permute.xlu0 %1189
    %v1192 = vsel %vm112, %v1190, 0
    %1194 = vmatprep.subr.bf16.mxu0 0
    %1195 = vmatpush1.bf16.msra.mxu0 %v173
    %1196 = vmatprep.subr.bf16.mxu0 0
    %1197 = vmatpush1.bf16.msra.mxu0 %v174
    %1198 = vmatprep.subr.bf16.mxu0 0
    %1199 = vmatpush1.bf16.msra.mxu0 0
    %1200 = vmatprep.subr.bf16.mxu0 0
    %1201 = vmatpush1.bf16.msra.mxu0 0
    %1202 = vmatprep.subr.bf16.mxu0 0
    %1203 = vmatpush1.bf16.msra.mxu0 0
    %1204 = vmatprep.subr.bf16.mxu0 0
    %1205 = vmatpush1.bf16.msra.mxu0 0
    %1206 = vmatprep.subr.bf16.mxu0 0
    %1207 = vmatpush1.bf16.msra.mxu0 0
    %1208 = vmatprep.subr.bf16.mxu0 0
    %1209 = vmatpush1.bf16.msra.mxu0 0
    %1210 = vmatprep.subr.bf16.mxu0 0
    %1211 = vmatpush1.bf16.msra.mxu0 0
    %1212 = vmatprep.subr.bf16.mxu0 0
    %1213 = vmatpush1.bf16.msra.mxu0 0
    %1214 = vmatprep.subr.bf16.mxu0 0
    %1215 = vmatpush1.bf16.msra.mxu0 0
    %1216 = vmatprep.subr.bf16.mxu0 0
    %1217 = vmatpush1.bf16.msra.mxu0 0
    %1218 = vmatprep.subr.bf16.mxu0 0
    %1219 = vmatpush1.bf16.msra.mxu0 0
    %1220 = vmatprep.subr.bf16.mxu0 0
    %1221 = vmatpush1.bf16.msra.mxu0 0
    %1222 = vmatprep.subr.bf16.mxu0 0
    %1223 = vmatpush1.bf16.msra.mxu0 0
    %1224 = vmatprep.subr.bf16.mxu0 0
    %1225 = vmatpush1.bf16.msra.mxu0 0
    %1226 = vmatprep.mubr.bf16.mxu0 0
    %1227 = vmatmul.mubr.bf16.gmra.mrb[0].mxu0 %v1192
    %v1228 = vpop.f32.mrb[0].mxu0
    %v1229 = vadd.f32 0.0, %v1228
    %v1230 = vpop.f32.mrb[0].mxu0
    %v1231 = vpop.f32.mrb[0].mxu0
    %v1232 = vpop.f32.mrb[0].mxu0
    %1233 = vdwg.mxu0
    %v1235 = vrot.slane %v1229, 4
    %v1237 = vadd.f32 %v1184, %v1235
    %v1238 = vpack.c.bf16 %v1173, %v1173
    %v1240 = vrot.slane %v1238, 2
    %1241 = vrot.lane.b32.xlu0 %v1240, 32
    %v1242 = vpop.permute.xlu0 %1241
    %v1244 = vsel %vm112, %v1242, 0
    %1246 = vmatprep.subr.bf16.mxu0 0
    %1247 = vmatpush1.bf16.msra.mxu0 %v229
    %1248 = vmatprep.subr.bf16.mxu0 0
    %1249 = vmatpush1.bf16.msra.mxu0 %v230
    %1250 = vmatprep.subr.bf16.mxu0 0
    %1251 = vmatpush1.bf16.msra.mxu0 0
    %1252 = vmatprep.subr.bf16.mxu0 0
    %1253 = vmatpush1.bf16.msra.mxu0 0
    %1254 = vmatprep.subr.bf16.mxu0 0
    %1255 = vmatpush1.bf16.msra.mxu0 0
    %1256 = vmatprep.subr.bf16.mxu0 0
    %1257 = vmatpush1.bf16.msra.mxu0 0
    %1258 = vmatprep.subr.bf16.mxu0 0
    %1259 = vmatpush1.bf16.msra.mxu0 0
    %1260 = vmatprep.subr.bf16.mxu0 0
    %1261 = vmatpush1.bf16.msra.mxu0 0
    %1262 = vmatprep.subr.bf16.mxu0 0
    %1263 = vmatpush1.bf16.msra.mxu0 0
    %1264 = vmatprep.subr.bf16.mxu0 0
    %1265 = vmatpush1.bf16.msra.mxu0 0
    %1266 = vmatprep.subr.bf16.mxu0 0
    %1267 = vmatpush1.bf16.msra.mxu0 0
    %1268 = vmatprep.subr.bf16.mxu0 0
    %1269 = vmatpush1.bf16.msra.mxu0 0
    %1270 = vmatprep.subr.bf16.mxu0 0
    %1271 = vmatpush1.bf16.msra.mxu0 0
    %1272 = vmatprep.subr.bf16.mxu0 0
    %1273 = vmatpush1.bf16.msra.mxu0 0
    %1274 = vmatprep.subr.bf16.mxu0 0
    %1275 = vmatpush1.bf16.msra.mxu0 0
    %1276 = vmatprep.subr.bf16.mxu0 0
    %1277 = vmatpush1.bf16.msra.mxu0 0
    %1278 = vmatprep.mubr.bf16.mxu0 0
    %1279 = vmatmul.mubr.bf16.gmra.mrb[0].mxu0 %v1244
    %v1280 = vpop.f32.mrb[0].mxu0
    %v1281 = vadd.f32 0.0, %v1280
    %v1282 = vpop.f32.mrb[0].mxu0
    %v1283 = vpop.f32.mrb[0].mxu0
    %v1284 = vpop.f32.mrb[0].mxu0
    %1285 = vdwg.mxu0
    %v1287 = vrot.slane %v1281, 6
    %v1289 = vadd.f32 %v1185, %v1287
    %v1290 = vxor.u32 %v1237, 2147483648
    %v1291 = vmul.f32 %v1290, 1.442695
    %v1292 = vpow.pop %v1291
    %v1293 = vadd.f32 %v1292, 1.0
    %v1294 = vrcp.pop %v1293
    %v1295 = vmul.f32 1.0, %v1294
    %v1296 = vtanh.pop %v1237
    %v1298 = vrot.slane %v1140, 6
    %v1300 = vmul.f32 %v1295, %v1298
    %1302 = vrot.lane.b32.xlu0 %v1296, 64
    %v1303 = vpop.permute.xlu0 %1302
    %v1305 = vmul.f32 %v1295, %v1303
    %1307 = vrot.lane.b32.xlu0 %v1305, 32
    %v1308 = vpop.permute.xlu0 %1307
    %v1310 = vadd.f32 %v1300, %v1308
    %v1311 = vtanh.pop %v1310
    %1313 = vrot.lane.b32.xlu0 %v1311, 64
    %v1314 = vpop.permute.xlu0 %1313
    %v1316 = vmul.f32 %v1295, %v1314
    %v1317 = vxor.u32 %v1289, 2147483648
    %v1318 = vmul.f32 %v1317, 1.442695
    %v1319 = vpow.pop %v1318
    %v1320 = vadd.f32 %v1319, 1.0
    %v1321 = vrcp.pop %v1320
    %v1322 = vmul.f32 1.0, %v1321
    %v1323 = vtanh.pop %v1289
    %v1325 = vrot.slane %v1167, 2
    %v1327 = vmul.f32 %v1322, %v1325
    %1329 = vrot.lane.b32.xlu0 %v1323, 64
    %v1330 = vpop.permute.xlu0 %1329
    %v1332 = vmul.f32 %v1322, %v1330
    %1334 = vrot.lane.b32.xlu0 %v1332, 32
    %v1335 = vpop.permute.xlu0 %1334
    %v1337 = vadd.f32 %v1327, %v1335
    %v1338 = vtanh.pop %v1337
    %1340 = vrot.lane.b32.xlu0 %v1338, 64
    %v1341 = vpop.permute.xlu0 %1340
    %v1343 = vmul.f32 %v1322, %v1341
    %1345 = vrot.lane.b32.xlu0 %v1316, 32
    %v1346 = vpop.permute.xlu0 %1345
    %1348 = vst.msk [vmem:[#allocation9 + $0x8] sm:$0x30] %vm672, %v1346
    %1350 = vrot.lane.b32.xlu0 %v1343, 64
    %v1351 = vpop.permute.xlu0 %1350
    %1353 = vst.msk [vmem:[#allocation9] sm:$0xc] %vm678, %v1351
    %v1354 = vld [vmem:[#allocation2 + $0x10] sm:$0xc0]
    %v1355 = vld [vmem:[#allocation2 + $0x8] sm:$0x3]
    %v1356 = vpack.c.bf16 %v1316, %v1316
    %v1358 = vrot.slane %v1356, 2
    %1359 = vrot.lane.b32.xlu0 %v1358, 32
    %v1360 = vpop.permute.xlu0 %1359
    %v1362 = vsel %vm112, %v1360, 0
    %1364 = vmatprep.subr.bf16.mxu0 0
    %1365 = vmatpush1.bf16.msra.mxu0 %v173
    %1366 = vmatprep.subr.bf16.mxu0 0
    %1367 = vmatpush1.bf16.msra.mxu0 %v174
    %1368 = vmatprep.subr.bf16.mxu0 0
    %1369 = vmatpush1.bf16.msra.mxu0 0
    %1370 = vmatprep.subr.bf16.mxu0 0
    %1371 = vmatpush1.bf16.msra.mxu0 0
    %1372 = vmatprep.subr.bf16.mxu0 0
    %1373 = vmatpush1.bf16.msra.mxu0 0
    %1374 = vmatprep.subr.bf16.mxu0 0
    %1375 = vmatpush1.bf16.msra.mxu0 0
    %1376 = vmatprep.subr.bf16.mxu0 0
    %1377 = vmatpush1.bf16.msra.mxu0 0
    %1378 = vmatprep.subr.bf16.mxu0 0
    %1379 = vmatpush1.bf16.msra.mxu0 0
    %1380 = vmatprep.subr.bf16.mxu0 0
    %1381 = vmatpush1.bf16.msra.mxu0 0
    %1382 = vmatprep.subr.bf16.mxu0 0
    %1383 = vmatpush1.bf16.msra.mxu0 0
    %1384 = vmatprep.subr.bf16.mxu0 0
    %1385 = vmatpush1.bf16.msra.mxu0 0
    %1386 = vmatprep.subr.bf16.mxu0 0
    %1387 = vmatpush1.bf16.msra.mxu0 0
    %1388 = vmatprep.subr.bf16.mxu0 0
    %1389 = vmatpush1.bf16.msra.mxu0 0
    %1390 = vmatprep.subr.bf16.mxu0 0
    %1391 = vmatpush1.bf16.msra.mxu0 0
    %1392 = vmatprep.subr.bf16.mxu0 0
    %1393 = vmatpush1.bf16.msra.mxu0 0
    %1394 = vmatprep.subr.bf16.mxu0 0
    %1395 = vmatpush1.bf16.msra.mxu0 0
    %1396 = vmatprep.mubr.bf16.mxu0 0
    %1397 = vmatmul.mubr.bf16.gmra.mrb[0].mxu0 %v1362
    %v1398 = vpop.f32.mrb[0].mxu0
    %v1399 = vadd.f32 0.0, %v1398
    %v1400 = vpop.f32.mrb[0].mxu0
    %v1401 = vpop.f32.mrb[0].mxu0
    %v1402 = vpop.f32.mrb[0].mxu0
    %1403 = vdwg.mxu0
    %v1405 = vrot.slane %v1399, 2
    %v1407 = vadd.f32 %v1354, %v1405
    %v1408 = vpack.c.bf16 %v1343, %v1343
    %v1410 = vrot.slane %v1408, 1
    %1411 = vrot.lane.b32.xlu0 %v1410, 32
    %v1412 = vpop.permute.xlu0 %1411
    %v1414 = vsel %vm112, %v1412, 0
    %1416 = vmatprep.subr.bf16.mxu0 0
    %1417 = vmatpush1.bf16.msra.mxu0 %v229
    %1418 = vmatprep.subr.bf16.mxu0 0
    %1419 = vmatpush1.bf16.msra.mxu0 %v230
    %1420 = vmatprep.subr.bf16.mxu0 0
    %1421 = vmatpush1.bf16.msra.mxu0 0
    %1422 = vmatprep.subr.bf16.mxu0 0
    %1423 = vmatpush1.bf16.msra.mxu0 0
    %1424 = vmatprep.subr.bf16.mxu0 0
    %1425 = vmatpush1.bf16.msra.mxu0 0
    %1426 = vmatprep.subr.bf16.mxu0 0
    %1427 = vmatpush1.bf16.msra.mxu0 0
    %1428 = vmatprep.subr.bf16.mxu0 0
    %1429 = vmatpush1.bf16.msra.mxu0 0
    %1430 = vmatprep.subr.bf16.mxu0 0
    %1431 = vmatpush1.bf16.msra.mxu0 0
    %1432 = vmatprep.subr.bf16.mxu0 0
    %1433 = vmatpush1.bf16.msra.mxu0 0
    %1434 = vmatprep.subr.bf16.mxu0 0
    %1435 = vmatpush1.bf16.msra.mxu0 0
    %1436 = vmatprep.subr.bf16.mxu0 0
    %1437 = vmatpush1.bf16.msra.mxu0 0
    %1438 = vmatprep.subr.bf16.mxu0 0
    %1439 = vmatpush1.bf16.msra.mxu0 0
    %1440 = vmatprep.subr.bf16.mxu0 0
    %1441 = vmatpush1.bf16.msra.mxu0 0
    %1442 = vmatprep.subr.bf16.mxu0 0
    %1443 = vmatpush1.bf16.msra.mxu0 0
    %1444 = vmatprep.subr.bf16.mxu0 0
    %1445 = vmatpush1.bf16.msra.mxu0 0
    %1446 = vmatprep.subr.bf16.mxu0 0
    %1447 = vmatpush1.bf16.msra.mxu0 0
    %1448 = vmatprep.mubr.bf16.mxu0 0
    %1449 = vmatmul.mubr.bf16.gmra.mrb[0].mxu0 %v1414
    %v1450 = vpop.f32.mrb[0].mxu0
    %v1451 = vadd.f32 0.0, %v1450
    %v1452 = vpop.f32.mrb[0].mxu0
    %v1453 = vpop.f32.mrb[0].mxu0
    %v1454 = vpop.f32.mrb[0].mxu0
    %1455 = vdwg.mxu0
    %v1456 = vadd.f32 %v1355, %v1451
    %v1457 = vxor.u32 %v1407, 2147483648
    %v1458 = vmul.f32 %v1457, 1.442695
    %v1459 = vpow.pop %v1458
    %v1460 = vadd.f32 %v1459, 1.0
    %v1461 = vrcp.pop %v1460
    %v1462 = vmul.f32 1.0, %v1461
    %v1463 = vtanh.pop %v1407
    %v1465 = vrot.slane %v1310, 6
    %v1467 = vmul.f32 %v1462, %v1465
    %1469 = vrot.lane.b32.xlu0 %v1463, 64
    %v1470 = vpop.permute.xlu0 %1469
    %v1472 = vmul.f32 %v1462, %v1470
    %1474 = vrot.lane.b32.xlu0 %v1472, 32
    %v1475 = vpop.permute.xlu0 %1474
    %v1477 = vadd.f32 %v1467, %v1475
    %v1478 = vtanh.pop %v1477
    %1480 = vrot.lane.b32.xlu0 %v1478, 64
    %v1481 = vpop.permute.xlu0 %1480
    %v1483 = vmul.f32 %v1462, %v1481
    %v1484 = vxor.u32 %v1456, 2147483648
    %v1485 = vmul.f32 %v1484, 1.442695
    %v1486 = vpow.pop %v1485
    %v1487 = vadd.f32 %v1486, 1.0
    %v1488 = vrcp.pop %v1487
    %v1489 = vmul.f32 1.0, %v1488
    %v1490 = vtanh.pop %v1456
    %v1492 = vrot.slane %v1337, 2
    %v1494 = vmul.f32 %v1489, %v1492
    %1496 = vrot.lane.b32.xlu0 %v1490, 64
    %v1497 = vpop.permute.xlu0 %1496
    %v1499 = vmul.f32 %v1489, %v1497
    %1501 = vrot.lane.b32.xlu0 %v1499, 32
    %v1502 = vpop.permute.xlu0 %1501
    %v1504 = vadd.f32 %v1494, %v1502
    %v1505 = vtanh.pop %v1504
    %1507 = vrot.lane.b32.xlu0 %v1505, 64
    %v1508 = vpop.permute.xlu0 %1507
    %v1510 = vmul.f32 %v1489, %v1508
    %1512 = vrot.lane.b32.xlu0 %v1483, 32
    %v1513 = vpop.permute.xlu0 %1512
    %1515 = vst.msk [vmem:[#allocation9 + $0x8] sm:$0xc0] %vm841, %v1513
    %1517 = vrot.lane.b32.xlu0 %v1510, 64
    %v1518 = vpop.permute.xlu0 %1517
    %1520 = vst.msk [vmem:[#allocation9] sm:$0x3] %vm847, %v1518
    // Predicated region
    $region30: #{tpu_custom_call.1} parent=1 // pred_check
      _
    $region31: #{tpu_custom_call.1} parent=1 // pred_check_branch
      %1522 = sbr.rel (0) target = $region33
    $region32: #{tpu_custom_call.1} parent=1 // pred_region
      %s1524 = ssub.s32 256, 256
      %1525 = vsyncadd [#allocation5], %s1524
      %s1526 = sshll.u32 [#allocation9], 4
      %s1527 = int_to_ptr.vmem [resolvable:$true] %s1526
      %1532 = dma.vmem_to_hbm [thread:$0]  %s1527, 256, %s4, [#allocation5], 128, 128, 8
    $region33: #{tpu_custom_call.1} parent=1 // pred_fallthru
      _
    // Predicated region
    $region34: #{tpu_custom_call.1} parent=1 // pred_check
      _
    $region35: #{tpu_custom_call.1} parent=1 // pred_check_branch
      %1534 = sbr.rel (0) target = $region37
    $region36: #{tpu_custom_call.1} parent=1 // pred_region
      %1535 = dma.done [#allocation5], 256
    $region37: #{tpu_custom_call.1} parent=1 // pred_fallthru
      _
    %1536 = vsyncpa [#allocation4], 1
    %1537 = vsyncpa [#allocation7], 1
    %1538 = vsyncpa [#allocation5], 1

</llo_original>
